<compile_context>
chip_gen: v7x
topology: tpu7x:2x2x1
jax: 0.10.0
libtpu: 0.0.40
codegen_flags: <defaults>
</compile_context>

<pallas_src>
import jax
import jax.numpy as jnp
from jax.experimental import pallas as pl
from jax.experimental.pallas import tpu as pltpu

EPS = 1e-5


# ---------------------------------------------------------------------------
# Fused kernel: one (batch, row-tile) block per grid step.
# ---------------------------------------------------------------------------
def _bottleneck_kernel(x_ref, halo_ref, w1_ref, s1_ref, b1_ref,
                       w2_ref, s2_ref, b2_ref, w3_ref, s3_ref, b3_ref,
                       o_ref, t1_ref, acc_ref):
    t = pl.program_id(1)
    n_tiles = pl.num_programs(1)

    th = t1_ref.shape[0] - 2
    W = t1_ref.shape[1]
    c1 = t1_ref.shape[2]
    c2 = acc_ref.shape[2]
    cin = x_ref.shape[3]
    cout = o_ref.shape[3]

    x = x_ref[0]                                           # (th, W, Cin) f32

    # ---- conv1 (1x1) + bn1 + relu on the main rows (bf16 matmul, f32 acc) ----
    xb = x.reshape(th * W, cin).astype(jnp.bfloat16)
    y1 = jnp.dot(xb, w1_ref[...], preferred_element_type=jnp.float32)
    y1 = jnp.maximum(y1 * s1_ref[...] + b1_ref[...], 0.0)
    t1_ref[1:th + 1] = y1.reshape(th, W, c1).astype(jnp.bfloat16)

    # ---- conv1 on the two halo rows (rows r0-1 and r0+th of the image) -------
    hb = halo_ref[...].reshape(2 * W, cin).astype(jnp.bfloat16)
    yh = jnp.dot(hb, w1_ref[...], preferred_element_type=jnp.float32)
    yh = jnp.maximum(yh * s1_ref[...] + b1_ref[...], 0.0)
    yh = yh.reshape(2, W, c1).astype(jnp.bfloat16)
    zero_row = jnp.zeros((W, c1), jnp.bfloat16)
    # Outside the image the 3x3 padding must be a zero *activation* row.
    t1_ref[0] = jnp.where(t > 0, yh[0], zero_row)
    t1_ref[th + 1] = jnp.where(t < n_tiles - 1, yh[1], zero_row)

    # ---- conv2 (3x3, pad=1, stride=1) + bn2 + relu ---------------------------
    # For each dy: one fat matmul (th*W, C1) @ (C1, 3*C2); the three dx taps are
    # folded into the output dim, then shift-accumulated along W into acc_ref.
    for dy in range(3):
        s = t1_ref[dy:dy + th].reshape(th * W, c1)                  # bf16 view
        p = jnp.dot(s, w2_ref[dy], preferred_element_type=jnp.float32)
        p = p.reshape(th, W, 3 * c2)
        p_left = p[:, :, 0:c2]             # kw=0: contributes to output col w>=1
        p_center = p[:, :, c2:2 * c2]      # kw=1
        p_right = p[:, :, 2 * c2:]         # kw=2: contributes to output col w<=W-2
        if dy == 0:
            acc_ref[...] = p_center
        else:
            acc_ref[...] += p_center
        acc_ref[:, 1:, :] += p_left[:, :W - 1, :]
        acc_ref[:, :W - 1, :] += p_right[:, 1:, :]

    y2 = jnp.maximum(acc_ref[...] * s2_ref[...] + b2_ref[...], 0.0)
    y2b = y2.reshape(th * W, c2).astype(jnp.bfloat16)

    # ---- conv3 (1x1) + bn3 + residual add (f32) + relu -----------------------
    y3 = jnp.dot(y2b, w3_ref[...], preferred_element_type=jnp.float32)
    y3 = y3 * s3_ref[...] + b3_ref[...]
    y3 = jnp.maximum(y3 + x.reshape(th * W, cout), 0.0)
    o_ref[0] = y3.reshape(th, W, cout).astype(o_ref.dtype)


# ---------------------------------------------------------------------------
# Wrapper
# ---------------------------------------------------------------------------
def _bn_fold(gamma, beta, mean, var):
    scale = gamma / jnp.sqrt(var + EPS)
    bias = beta - mean * scale
    return scale[None, :].astype(jnp.float32), bias[None, :].astype(jnp.float32)


def _pick_row_tile(h):
    for th in (32, 16, 8):
        if h % th == 0 and h // th >= 2:
            return th
    for th in (32, 16, 8):
        if h % th == 0:
            return th
    return h


def bottleneck_fused_nhwc(x, params):
    N, H, W, Cin = x.shape
    w1, w2, w3 = params["w1"], params["w2"], params["w3"]
    C1 = w1.shape[0]            # planes
    C2 = w2.shape[0]            # planes
    Cout = w3.shape[0]          # 4 * planes
    assert Cout == Cin, "identity residual requires inplanes == 4*planes"

    th = _pick_row_tile(H)
    n_tiles = H // th

    # Fold BN (inference mode) into per-channel scale/bias.
    s1, b1 = _bn_fold(*params["bn1"])
    s2, b2 = _bn_fold(*params["bn2"])
    s3, b3 = _bn_fold(*params["bn3"])

    # Pack weights (bf16 MXU operands).
    w1b = jnp.transpose(w1[:, :, 0, 0], (1, 0)).astype(jnp.bfloat16)      # (Cin, C1)
    # (Cout, Cin, kh, kw) -> (kh, Cin, kw, Cout) -> (3, C1, 3*C2): dx folded into N.
    w2b = jnp.transpose(w2, (2, 1, 3, 0)).reshape(3, C1, 3 * C2).astype(jnp.bfloat16)
    w3b = jnp.transpose(w3[:, :, 0, 0], (1, 0)).astype(jnp.bfloat16)      # (C2, Cout)

    # One-row top/bottom halos of x per row-tile (clamped; border tiles are
    # zeroed *after* conv1 inside the kernel, matching zero-padded conv semantics).
    starts = jnp.arange(n_tiles) * th
    top = jnp.clip(starts - 1, 0, H - 1)
    bot = jnp.clip(starts + th, 0, H - 1)
    halo = jnp.stack([x[:, top], x[:, bot]], axis=2)       # (N, n_tiles, 2, W, Cin)

    flops = int(2 * N * H * W * (Cin * C1 + 9 * C1 * C2 + C2 * Cout))
    bytes_accessed = int(4 * (x.size + halo.size + N * H * W * Cout)
                         + 2 * (w1b.size + w2b.size + w3b.size)
                         + 8 * (C1 + C2 + Cout))

    return pl.pallas_call(
        _bottleneck_kernel,
        out_shape=jax.ShapeDtypeStruct((N, H, W, Cout), x.dtype),
        grid=(N, n_tiles),
        in_specs=[
            pl.BlockSpec((1, th, W, Cin), lambda n, t: (n, t, 0, 0)),
            pl.BlockSpec((1, 1, 2, W, Cin), lambda n, t: (n, t, 0, 0, 0)),
            pl.BlockSpec((Cin, C1), lambda n, t: (0, 0)),
            pl.BlockSpec((1, C1), lambda n, t: (0, 0)),
            pl.BlockSpec((1, C1), lambda n, t: (0, 0)),
            pl.BlockSpec((3, C1, 3 * C2), lambda n, t: (0, 0, 0)),
            pl.BlockSpec((1, C2), lambda n, t: (0, 0)),
            pl.BlockSpec((1, C2), lambda n, t: (0, 0)),
            pl.BlockSpec((C2, Cout), lambda n, t: (0, 0)),
            pl.BlockSpec((1, Cout), lambda n, t: (0, 0)),
            pl.BlockSpec((1, Cout), lambda n, t: (0, 0)),
        ],
        out_specs=pl.BlockSpec((1, th, W, Cout), lambda n, t: (n, t, 0, 0)),
        scratch_shapes=[
            pltpu.VMEM((th + 2, W, C1), jnp.bfloat16),   # row-padded conv1 output
            pltpu.VMEM((th, W, C2), jnp.float32),        # conv2 accumulator
        ],
        compiler_params=pltpu.CompilerParams(
            dimension_semantics=("parallel", "parallel"),
            vmem_limit_bytes=32 * 1024 * 1024),
        cost_estimate=pl.CostEstimate(flops=flops, transcendentals=0,
                                      bytes_accessed=bytes_accessed),
    )(x, halo, w1b, s1, b1, w2b, s2, b2, w3b, s3, b3)


@jax.jit
def bottleneck_forward(x_nchw, params):
    x = jnp.transpose(x_nchw, (0, 2, 3, 1))               # NCHW -> NHWC
    out = bottleneck_fused_nhwc(x, params)
    return jnp.transpose(out, (0, 3, 1, 2))               # NHWC -> NCHW


# ---------------------------------------------------------------------------
# Reference (same inference-mode BN; mirrors the bf16-operand matmul precision)
# ---------------------------------------------------------------------------
def ref_forward(x_nchw, params):
    x = jnp.transpose(x_nchw, (0, 2, 3, 1)).astype(jnp.float32)

    def bn(y, g, b, m, v):
        return (y - m) / jnp.sqrt(v + EPS) * g + b

    def conv(y, w, pad):
        return jax.lax.conv_general_dilated(
            y.astype(jnp.bfloat16),
            jnp.transpose(w, (2, 3, 1, 0)).astype(jnp.bfloat16),
            window_strides=(1, 1), padding=pad,
            dimension_numbers=("NHWC", "HWIO", "NHWC"),
            preferred_element_type=jnp.float32)

    out = jax.nn.relu(bn(conv(x, params["w1"], "VALID"), *params["bn1"]))
    out = jax.nn.relu(bn(conv(out, params["w2"], "SAME"), *params["bn2"]))
    out = bn(conv(out, params["w3"], "VALID"), *params["bn3"])
    out = jax.nn.relu(out + x)
    return jnp.transpose(out, (0, 3, 1, 2))


# ---------------------------------------------------------------------------
def make_params(key, inplanes, planes):
    ks = jax.random.split(key, 6)

    def bn_params(k, c):
        kg, kb, km, kv = jax.random.split(k, 4)
        gamma = 1.0 + 0.1 * jax.random.normal(kg, (c,), jnp.float32)
        beta = 0.1 * jax.random.normal(kb, (c,), jnp.float32)
        mean = 0.1 * jax.random.normal(km, (c,), jnp.float32)
        var = jax.nn.softplus(jax.random.normal(kv, (c,), jnp.float32)) + 0.5
        return (gamma, beta, mean, var)

    return {
        "w1": 0.1 * jax.random.normal(ks[0], (planes, inplanes, 1, 1), jnp.float32),
        "bn1": bn_params(ks[1], planes),
        "w2": 0.1 * jax.random.normal(ks[2], (planes, planes, 3, 3), jnp.float32),
        "bn2": bn_params(ks[3], planes),
        "w3": 0.1 * jax.random.normal(ks[4], (planes * 4, planes, 1, 1), jnp.float32),
        "bn3": bn_params(ks[5], planes * 4),
    }


if __name__ == "__main__":
    key = jax.random.PRNGKey(0)
    kx, kp = jax.random.split(key)

    planes = 32
    inplanes = planes * 4          # 128 -> identity residual valid, lane-dense output
    N, H, W = 2, 16, 16            # row tile 8 -> grid (2, 2)

    x = jax.random.normal(kx, (N, inplanes, H, W), jnp.float32)   # NCHW input
    params = make_params(kp, inplanes, planes)

    out = jax.block_until_ready(bottleneck_forward(x, params))
    ref = ref_forward(x, params)

    assert out.shape == (N, inplanes, H, W)
    err = float(jnp.max(jnp.abs(out - ref)))
    assert err < 1e-2, err

    print("KERNEL_OK")
</pallas_src>

<mosaic_0001>
module attributes {stable_mosaic.version = 11 : i64} {
  func.func @_bottleneck_kernel(%arg0: i32, %arg1: i32, %arg2: memref<1x8x16x128xf32, #tpu.memory_space<vmem>>, %arg3: memref<1x1x2x16x128xf32, #tpu.memory_space<vmem>>, %arg4: memref<128x32xbf16, #tpu.memory_space<vmem>>, %arg5: memref<1x32xf32, #tpu.memory_space<vmem>>, %arg6: memref<1x32xf32, #tpu.memory_space<vmem>>, %arg7: memref<3x32x96xbf16, #tpu.memory_space<vmem>>, %arg8: memref<1x32xf32, #tpu.memory_space<vmem>>, %arg9: memref<1x32xf32, #tpu.memory_space<vmem>>, %arg10: memref<32x128xbf16, #tpu.memory_space<vmem>>, %arg11: memref<1x128xf32, #tpu.memory_space<vmem>>, %arg12: memref<1x128xf32, #tpu.memory_space<vmem>>, %arg13: memref<1x8x16x128xf32, #tpu.memory_space<vmem>>, %arg14: memref<10x16x32xbf16, #tpu.memory_space<vmem>>, %arg15: memref<8x16x32xf32, #tpu.memory_space<vmem>>) attributes {dimension_semantics = [#tpu.dimension_semantics<parallel>, #tpu.dimension_semantics<parallel>], iteration_bounds = array<i64: 2, 2>, scalar_prefetch = 0 : i64, scratch_operands = 2 : i64, tpu.core_type = #tpu.core_type<tc>, window_params = [{transform_indices = @transform_0, window_bounds = array<i64: 1, 8, 16, 128>}, {transform_indices = @transform_1, window_bounds = array<i64: 1, 1, 2, 16, 128>}, {pipeline_mode = #tpu.pipeline_mode<synchronous>, transform_indices = @transform_2, window_bounds = array<i64: 128, 32>}, {pipeline_mode = #tpu.pipeline_mode<synchronous>, transform_indices = @transform_3, window_bounds = array<i64: 1, 32>}, {pipeline_mode = #tpu.pipeline_mode<synchronous>, transform_indices = @transform_4, window_bounds = array<i64: 1, 32>}, {pipeline_mode = #tpu.pipeline_mode<synchronous>, transform_indices = @transform_5, window_bounds = array<i64: 3, 32, 96>}, {pipeline_mode = #tpu.pipeline_mode<synchronous>, transform_indices = @transform_6, window_bounds = array<i64: 1, 32>}, {pipeline_mode = #tpu.pipeline_mode<synchronous>, transform_indices = @transform_7, window_bounds = array<i64: 1, 32>}, {pipeline_mode = #tpu.pipeline_mode<synchronous>, transform_indices = @transform_8, window_bounds = array<i64: 32, 128>}, {pipeline_mode = #tpu.pipeline_mode<synchronous>, transform_indices = @transform_9, window_bounds = array<i64: 1, 128>}, {pipeline_mode = #tpu.pipeline_mode<synchronous>, transform_indices = @transform_10, window_bounds = array<i64: 1, 128>}, {transform_indices = @transform_11, window_bounds = array<i64: 1, 8, 16, 128>}]} {
    %c0 = arith.constant 0 : index
    %c0_0 = arith.constant 0 : index
    %c0_1 = arith.constant 0 : index
    %c0_2 = arith.constant 0 : index
    %0 = vector.load %arg2[%c0, %c0_0, %c0_1, %c0_2] : memref<1x8x16x128xf32, #tpu.memory_space<vmem>>, vector<1x8x16x128xf32>
    %1 = vector.shape_cast %0 : vector<1x8x16x128xf32> to vector<8x16x128xf32>
    %2 = vector.shape_cast %1 : vector<8x16x128xf32> to vector<128x128xf32>
    %3 = arith.truncf %2 : vector<128x128xf32> to vector<128x128xbf16>
    %c0_3 = arith.constant 0 : index
    %c0_4 = arith.constant 0 : index
    %4 = vector.load %arg4[%c0_3, %c0_4] : memref<128x32xbf16, #tpu.memory_space<vmem>>, vector<128x32xbf16>
    %cst = arith.constant dense<0.000000e+00> : vector<128x32xf32>
    %5 = tpu.matmul %3, %4, %cst {dimension_numbers = #tpu.dot_dimension_numbers<[1], [0], [0], [1], [0, 0, 1, 1], [], []>} : vector<128x128xbf16>, vector<128x32xbf16>, vector<128x32xf32> -> vector<128x32xf32>
    %c0_5 = arith.constant 0 : index
    %c0_6 = arith.constant 0 : index
    %6 = vector.load %arg5[%c0_5, %c0_6] : memref<1x32xf32, #tpu.memory_space<vmem>>, vector<1x32xf32>
    %7 = vector.broadcast %6 : vector<1x32xf32> to vector<128x32xf32>
    %8 = arith.mulf %5, %7 : vector<128x32xf32>
    %c0_7 = arith.constant 0 : index
    %c0_8 = arith.constant 0 : index
    %9 = vector.load %arg6[%c0_7, %c0_8] : memref<1x32xf32, #tpu.memory_space<vmem>>, vector<1x32xf32>
    %10 = vector.broadcast %9 : vector<1x32xf32> to vector<128x32xf32>
    %11 = arith.addf %8, %10 : vector<128x32xf32>
    %cst_9 = arith.constant 0.000000e+00 : f32
    %12 = vector.broadcast %cst_9 : f32 to vector<128x32xf32>
    %13 = arith.maximumf %11, %12 : vector<128x32xf32>
    %14 = vector.shape_cast %13 : vector<128x32xf32> to vector<8x16x32xf32>
    %15 = arith.truncf %14 : vector<8x16x32xf32> to vector<8x16x32xbf16>
    %c1 = arith.constant 1 : index
    %c0_10 = arith.constant 0 : index
    %c0_11 = arith.constant 0 : index
    %16 = vector.load %arg14[%c1, %c0_10, %c0_11] : memref<10x16x32xbf16, #tpu.memory_space<vmem>>, vector<8x16x32xbf16>
    tpu.vector_store %arg14[%c1, %c0_10, %c0_11], %15 {strides = array<i32>} : memref<10x16x32xbf16, #tpu.memory_space<vmem>>, vector<8x16x32xbf16>,
    %c0_12 = arith.constant 0 : index
    %c0_13 = arith.constant 0 : index
    %c0_14 = arith.constant 0 : index
    %c0_15 = arith.constant 0 : index
    %c0_16 = arith.constant 0 : index
    %17 = vector.load %arg3[%c0_12, %c0_13, %c0_14, %c0_15, %c0_16] : memref<1x1x2x16x128xf32, #tpu.memory_space<vmem>>, vector<1x1x2x16x128xf32>
    %18 = vector.shape_cast %17 : vector<1x1x2x16x128xf32> to vector<32x128xf32>
    %19 = arith.truncf %18 : vector<32x128xf32> to vector<32x128xbf16>
    %c0_17 = arith.constant 0 : index
    %c0_18 = arith.constant 0 : index
    %20 = vector.load %arg4[%c0_17, %c0_18] : memref<128x32xbf16, #tpu.memory_space<vmem>>, vector<128x32xbf16>
    %cst_19 = arith.constant dense<0.000000e+00> : vector<32x32xf32>
    %21 = tpu.matmul %19, %20, %cst_19 {dimension_numbers = #tpu.dot_dimension_numbers<[1], [0], [0], [1], [0, 0, 1, 1], [], []>} : vector<32x128xbf16>, vector<128x32xbf16>, vector<32x32xf32> -> vector<32x32xf32>
    %c0_20 = arith.constant 0 : index
    %c0_21 = arith.constant 0 : index
    %22 = vector.load %arg5[%c0_20, %c0_21] : memref<1x32xf32, #tpu.memory_space<vmem>>, vector<1x32xf32>
    %23 = vector.broadcast %22 : vector<1x32xf32> to vector<32x32xf32>
    %24 = arith.mulf %21, %23 : vector<32x32xf32>
    %c0_22 = arith.constant 0 : index
    %c0_23 = arith.constant 0 : index
    %25 = vector.load %arg6[%c0_22, %c0_23] : memref<1x32xf32, #tpu.memory_space<vmem>>, vector<1x32xf32>
    %26 = vector.broadcast %25 : vector<1x32xf32> to vector<32x32xf32>
    %27 = arith.addf %24, %26 : vector<32x32xf32>
    %cst_24 = arith.constant 0.000000e+00 : f32
    %28 = vector.broadcast %cst_24 : f32 to vector<32x32xf32>
    %29 = arith.maximumf %27, %28 : vector<32x32xf32>
    %30 = vector.shape_cast %29 : vector<32x32xf32> to vector<2x16x32xf32>
    %31 = arith.truncf %30 : vector<2x16x32xf32> to vector<2x16x32xbf16>
    %cst_25 = arith.constant 0.000000e+00 : bf16
    %32 = vector.broadcast %cst_25 : bf16 to vector<16x32xbf16>
    %c0_i32 = arith.constant 0 : i32
    %33 = arith.cmpi sgt, %arg1, %c0_i32 : i32
    %34 = vector.extract_strided_slice %31 {offsets = [0, 0, 0], sizes = [1, 16, 32], strides = [1, 1, 1]} : vector<2x16x32xbf16> to vector<1x16x32xbf16>
    %35 = vector.shape_cast %34 : vector<1x16x32xbf16> to vector<16x32xbf16>
    %36 = arith.select %33, %35, %32 : vector<16x32xbf16>
    %c0_26 = arith.constant 0 : index
    %c0_27 = arith.constant 0 : index
    %c0_28 = arith.constant 0 : index
    %37 = vector.load %arg14[%c0_26, %c0_27, %c0_28] : memref<10x16x32xbf16, #tpu.memory_space<vmem>>, vector<1x16x32xbf16>
    %38 = vector.shape_cast %37 : vector<1x16x32xbf16> to vector<16x32xbf16>
    %39 = vector.shape_cast %36 : vector<16x32xbf16> to vector<1x16x32xbf16>
    tpu.vector_store %arg14[%c0_26, %c0_27, %c0_28], %39 {strides = array<i32>} : memref<10x16x32xbf16, #tpu.memory_space<vmem>>, vector<1x16x32xbf16>,
    %c1_i32 = arith.constant 1 : i32
    %40 = arith.cmpi slt, %arg1, %c1_i32 : i32
    %41 = vector.extract_strided_slice %31 {offsets = [1, 0, 0], sizes = [1, 16, 32], strides = [1, 1, 1]} : vector<2x16x32xbf16> to vector<1x16x32xbf16>
    %42 = vector.shape_cast %41 : vector<1x16x32xbf16> to vector<16x32xbf16>
    %43 = arith.select %40, %42, %32 : vector<16x32xbf16>
    %c9 = arith.constant 9 : index
    %c0_29 = arith.constant 0 : index
    %c0_30 = arith.constant 0 : index
    %44 = vector.load %arg14[%c9, %c0_29, %c0_30] : memref<10x16x32xbf16, #tpu.memory_space<vmem>>, vector<1x16x32xbf16>
    %45 = vector.shape_cast %44 : vector<1x16x32xbf16> to vector<16x32xbf16>
    %46 = vector.shape_cast %43 : vector<16x32xbf16> to vector<1x16x32xbf16>
    tpu.vector_store %arg14[%c9, %c0_29, %c0_30], %46 {strides = array<i32>} : memref<10x16x32xbf16, #tpu.memory_space<vmem>>, vector<1x16x32xbf16>,
    %c0_31 = arith.constant 0 : index
    %c0_32 = arith.constant 0 : index
    %c0_33 = arith.constant 0 : index
    %47 = vector.load %arg14[%c0_31, %c0_32, %c0_33] : memref<10x16x32xbf16, #tpu.memory_space<vmem>>, vector<8x16x32xbf16>
    %48 = vector.shape_cast %47 : vector<8x16x32xbf16> to vector<128x32xbf16>
    %c0_34 = arith.constant 0 : index
    %c0_35 = arith.constant 0 : index
    %c0_36 = arith.constant 0 : index
    %49 = vector.load %arg7[%c0_34, %c0_35, %c0_36] : memref<3x32x96xbf16, #tpu.memory_space<vmem>>, vector<1x32x96xbf16>
    %50 = vector.shape_cast %49 : vector<1x32x96xbf16> to vector<32x96xbf16>
    %cst_37 = arith.constant dense<0.000000e+00> : vector<128x96xf32>
    %51 = tpu.matmul %48, %50, %cst_37 {dimension_numbers = #tpu.dot_dimension_numbers<[1], [0], [0], [1], [0, 0, 1, 1], [], []>} : vector<128x32xbf16>, vector<32x96xbf16>, vector<128x96xf32> -> vector<128x96xf32>
    %52 = vector.shape_cast %51 : vector<128x96xf32> to vector<8x16x96xf32>
    %53 = vector.extract_strided_slice %52 {offsets = [0, 0, 0], sizes = [8, 16, 32], strides = [1, 1, 1]} : vector<8x16x96xf32> to vector<8x16x32xf32>
    %54 = vector.extract_strided_slice %52 {offsets = [0, 0, 32], sizes = [8, 16, 32], strides = [1, 1, 1]} : vector<8x16x96xf32> to vector<8x16x32xf32>
    %55 = vector.extract_strided_slice %52 {offsets = [0, 0, 64], sizes = [8, 16, 32], strides = [1, 1, 1]} : vector<8x16x96xf32> to vector<8x16x32xf32>
    %c0_38 = arith.constant 0 : index
    %c0_39 = arith.constant 0 : index
    %c0_40 = arith.constant 0 : index
    %56 = vector.load %arg15[%c0_38, %c0_39, %c0_40] : memref<8x16x32xf32, #tpu.memory_space<vmem>>, vector<8x16x32xf32>
    tpu.vector_store %arg15[%c0_38, %c0_39, %c0_40], %54 {strides = array<i32>} : memref<8x16x32xf32, #tpu.memory_space<vmem>>, vector<8x16x32xf32>,
    %c0_41 = arith.constant 0 : index
    %c1_42 = arith.constant 1 : index
    %c0_43 = arith.constant 0 : index
    %57 = vector.load %arg15[%c0_41, %c1_42, %c0_43] : memref<8x16x32xf32, #tpu.memory_space<vmem>>, vector<8x15x32xf32>
    %58 = vector.extract_strided_slice %53 {offsets = [0, 0, 0], sizes = [8, 15, 32], strides = [1, 1, 1]} : vector<8x16x32xf32> to vector<8x15x32xf32>
    %59 = arith.addf %57, %58 : vector<8x15x32xf32>
    %c0_44 = arith.constant 0 : index
    %c1_45 = arith.constant 1 : index
    %c0_46 = arith.constant 0 : index
    %60 = vector.load %arg15[%c0_44, %c1_45, %c0_46] : memref<8x16x32xf32, #tpu.memory_space<vmem>>, vector<8x15x32xf32>
    tpu.vector_store %arg15[%c0_44, %c1_45, %c0_46], %59 {strides = array<i32>} : memref<8x16x32xf32, #tpu.memory_space<vmem>>, vector<8x15x32xf32>,
    %c0_47 = arith.constant 0 : index
    %c0_48 = arith.constant 0 : index
    %c0_49 = arith.constant 0 : index
    %61 = vector.load %arg15[%c0_47, %c0_48, %c0_49] : memref<8x16x32xf32, #tpu.memory_space<vmem>>, vector<8x15x32xf32>
    %62 = vector.extract_strided_slice %55 {offsets = [0, 1, 0], sizes = [8, 15, 32], strides = [1, 1, 1]} : vector<8x16x32xf32> to vector<8x15x32xf32>
    %63 = arith.addf %61, %62 : vector<8x15x32xf32>
    %c0_50 = arith.constant 0 : index
    %c0_51 = arith.constant 0 : index
    %c0_52 = arith.constant 0 : index
    %64 = vector.load %arg15[%c0_50, %c0_51, %c0_52] : memref<8x16x32xf32, #tpu.memory_space<vmem>>, vector<8x15x32xf32>
    tpu.vector_store %arg15[%c0_50, %c0_51, %c0_52], %63 {strides = array<i32>} : memref<8x16x32xf32, #tpu.memory_space<vmem>>, vector<8x15x32xf32>,
    %c1_53 = arith.constant 1 : index
    %c0_54 = arith.constant 0 : index
    %c0_55 = arith.constant 0 : index
    %65 = vector.load %arg14[%c1_53, %c0_54, %c0_55] : memref<10x16x32xbf16, #tpu.memory_space<vmem>>, vector<8x16x32xbf16>
    %66 = vector.shape_cast %65 : vector<8x16x32xbf16> to vector<128x32xbf16>
    %c1_56 = arith.constant 1 : index
    %c0_57 = arith.constant 0 : index
    %c0_58 = arith.constant 0 : index
    %67 = vector.load %arg7[%c1_56, %c0_57, %c0_58] : memref<3x32x96xbf16, #tpu.memory_space<vmem>>, vector<1x32x96xbf16>
    %68 = vector.shape_cast %67 : vector<1x32x96xbf16> to vector<32x96xbf16>
    %cst_59 = arith.constant dense<0.000000e+00> : vector<128x96xf32>
    %69 = tpu.matmul %66, %68, %cst_59 {dimension_numbers = #tpu.dot_dimension_numbers<[1], [0], [0], [1], [0, 0, 1, 1], [], []>} : vector<128x32xbf16>, vector<32x96xbf16>, vector<128x96xf32> -> vector<128x96xf32>
    %70 = vector.shape_cast %69 : vector<128x96xf32> to vector<8x16x96xf32>
    %71 = vector.extract_strided_slice %70 {offsets = [0, 0, 0], sizes = [8, 16, 32], strides = [1, 1, 1]} : vector<8x16x96xf32> to vector<8x16x32xf32>
    %72 = vector.extract_strided_slice %70 {offsets = [0, 0, 32], sizes = [8, 16, 32], strides = [1, 1, 1]} : vector<8x16x96xf32> to vector<8x16x32xf32>
    %73 = vector.extract_strided_slice %70 {offsets = [0, 0, 64], sizes = [8, 16, 32], strides = [1, 1, 1]} : vector<8x16x96xf32> to vector<8x16x32xf32>
    %c0_60 = arith.constant 0 : index
    %c0_61 = arith.constant 0 : index
    %c0_62 = arith.constant 0 : index
    %74 = vector.load %arg15[%c0_60, %c0_61, %c0_62] : memref<8x16x32xf32, #tpu.memory_space<vmem>>, vector<8x16x32xf32>
    %75 = arith.addf %74, %72 : vector<8x16x32xf32>
    %c0_63 = arith.constant 0 : index
    %c0_64 = arith.constant 0 : index
    %c0_65 = arith.constant 0 : index
    %76 = vector.load %arg15[%c0_63, %c0_64, %c0_65] : memref<8x16x32xf32, #tpu.memory_space<vmem>>, vector<8x16x32xf32>
    tpu.vector_store %arg15[%c0_63, %c0_64, %c0_65], %75 {strides = array<i32>} : memref<8x16x32xf32, #tpu.memory_space<vmem>>, vector<8x16x32xf32>,
    %c0_66 = arith.constant 0 : index
    %c1_67 = arith.constant 1 : index
    %c0_68 = arith.constant 0 : index
    %77 = vector.load %arg15[%c0_66, %c1_67, %c0_68] : memref<8x16x32xf32, #tpu.memory_space<vmem>>, vector<8x15x32xf32>
    %78 = vector.extract_strided_slice %71 {offsets = [0, 0, 0], sizes = [8, 15, 32], strides = [1, 1, 1]} : vector<8x16x32xf32> to vector<8x15x32xf32>
    %79 = arith.addf %77, %78 : vector<8x15x32xf32>
    %c0_69 = arith.constant 0 : index
    %c1_70 = arith.constant 1 : index
    %c0_71 = arith.constant 0 : index
    %80 = vector.load %arg15[%c0_69, %c1_70, %c0_71] : memref<8x16x32xf32, #tpu.memory_space<vmem>>, vector<8x15x32xf32>
    tpu.vector_store %arg15[%c0_69, %c1_70, %c0_71], %79 {strides = array<i32>} : memref<8x16x32xf32, #tpu.memory_space<vmem>>, vector<8x15x32xf32>,
    %c0_72 = arith.constant 0 : index
    %c0_73 = arith.constant 0 : index
    %c0_74 = arith.constant 0 : index
    %81 = vector.load %arg15[%c0_72, %c0_73, %c0_74] : memref<8x16x32xf32, #tpu.memory_space<vmem>>, vector<8x15x32xf32>
    %82 = vector.extract_strided_slice %73 {offsets = [0, 1, 0], sizes = [8, 15, 32], strides = [1, 1, 1]} : vector<8x16x32xf32> to vector<8x15x32xf32>
    %83 = arith.addf %81, %82 : vector<8x15x32xf32>
    %c0_75 = arith.constant 0 : index
    %c0_76 = arith.constant 0 : index
    %c0_77 = arith.constant 0 : index
    %84 = vector.load %arg15[%c0_75, %c0_76, %c0_77] : memref<8x16x32xf32, #tpu.memory_space<vmem>>, vector<8x15x32xf32>
    tpu.vector_store %arg15[%c0_75, %c0_76, %c0_77], %83 {strides = array<i32>} : memref<8x16x32xf32, #tpu.memory_space<vmem>>, vector<8x15x32xf32>,
    %c2 = arith.constant 2 : index
    %c0_78 = arith.constant 0 : index
    %c0_79 = arith.constant 0 : index
    %85 = vector.load %arg14[%c2, %c0_78, %c0_79] : memref<10x16x32xbf16, #tpu.memory_space<vmem>>, vector<8x16x32xbf16>
    %86 = vector.shape_cast %85 : vector<8x16x32xbf16> to vector<128x32xbf16>
    %c2_80 = arith.constant 2 : index
    %c0_81 = arith.constant 0 : index
    %c0_82 = arith.constant 0 : index
    %87 = vector.load %arg7[%c2_80, %c0_81, %c0_82] : memref<3x32x96xbf16, #tpu.memory_space<vmem>>, vector<1x32x96xbf16>
    %88 = vector.shape_cast %87 : vector<1x32x96xbf16> to vector<32x96xbf16>
    %cst_83 = arith.constant dense<0.000000e+00> : vector<128x96xf32>
    %89 = tpu.matmul %86, %88, %cst_83 {dimension_numbers = #tpu.dot_dimension_numbers<[1], [0], [0], [1], [0, 0, 1, 1], [], []>} : vector<128x32xbf16>, vector<32x96xbf16>, vector<128x96xf32> -> vector<128x96xf32>
    %90 = vector.shape_cast %89 : vector<128x96xf32> to vector<8x16x96xf32>
    %91 = vector.extract_strided_slice %90 {offsets = [0, 0, 0], sizes = [8, 16, 32], strides = [1, 1, 1]} : vector<8x16x96xf32> to vector<8x16x32xf32>
    %92 = vector.extract_strided_slice %90 {offsets = [0, 0, 32], sizes = [8, 16, 32], strides = [1, 1, 1]} : vector<8x16x96xf32> to vector<8x16x32xf32>
    %93 = vector.extract_strided_slice %90 {offsets = [0, 0, 64], sizes = [8, 16, 32], strides = [1, 1, 1]} : vector<8x16x96xf32> to vector<8x16x32xf32>
    %c0_84 = arith.constant 0 : index
    %c0_85 = arith.constant 0 : index
    %c0_86 = arith.constant 0 : index
    %94 = vector.load %arg15[%c0_84, %c0_85, %c0_86] : memref<8x16x32xf32, #tpu.memory_space<vmem>>, vector<8x16x32xf32>
    %95 = arith.addf %94, %92 : vector<8x16x32xf32>
    %c0_87 = arith.constant 0 : index
    %c0_88 = arith.constant 0 : index
    %c0_89 = arith.constant 0 : index
    %96 = vector.load %arg15[%c0_87, %c0_88, %c0_89] : memref<8x16x32xf32, #tpu.memory_space<vmem>>, vector<8x16x32xf32>
    tpu.vector_store %arg15[%c0_87, %c0_88, %c0_89], %95 {strides = array<i32>} : memref<8x16x32xf32, #tpu.memory_space<vmem>>, vector<8x16x32xf32>,
    %c0_90 = arith.constant 0 : index
    %c1_91 = arith.constant 1 : index
    %c0_92 = arith.constant 0 : index
    %97 = vector.load %arg15[%c0_90, %c1_91, %c0_92] : memref<8x16x32xf32, #tpu.memory_space<vmem>>, vector<8x15x32xf32>
    %98 = vector.extract_strided_slice %91 {offsets = [0, 0, 0], sizes = [8, 15, 32], strides = [1, 1, 1]} : vector<8x16x32xf32> to vector<8x15x32xf32>
    %99 = arith.addf %97, %98 : vector<8x15x32xf32>
    %c0_93 = arith.constant 0 : index
    %c1_94 = arith.constant 1 : index
    %c0_95 = arith.constant 0 : index
    %100 = vector.load %arg15[%c0_93, %c1_94, %c0_95] : memref<8x16x32xf32, #tpu.memory_space<vmem>>, vector<8x15x32xf32>
    tpu.vector_store %arg15[%c0_93, %c1_94, %c0_95], %99 {strides = array<i32>} : memref<8x16x32xf32, #tpu.memory_space<vmem>>, vector<8x15x32xf32>,
    %c0_96 = arith.constant 0 : index
    %c0_97 = arith.constant 0 : index
    %c0_98 = arith.constant 0 : index
    %101 = vector.load %arg15[%c0_96, %c0_97, %c0_98] : memref<8x16x32xf32, #tpu.memory_space<vmem>>, vector<8x15x32xf32>
    %102 = vector.extract_strided_slice %93 {offsets = [0, 1, 0], sizes = [8, 15, 32], strides = [1, 1, 1]} : vector<8x16x32xf32> to vector<8x15x32xf32>
    %103 = arith.addf %101, %102 : vector<8x15x32xf32>
    %c0_99 = arith.constant 0 : index
    %c0_100 = arith.constant 0 : index
    %c0_101 = arith.constant 0 : index
    %104 = vector.load %arg15[%c0_99, %c0_100, %c0_101] : memref<8x16x32xf32, #tpu.memory_space<vmem>>, vector<8x15x32xf32>
    tpu.vector_store %arg15[%c0_99, %c0_100, %c0_101], %103 {strides = array<i32>} : memref<8x16x32xf32, #tpu.memory_space<vmem>>, vector<8x15x32xf32>,
    %c0_102 = arith.constant 0 : index
    %c0_103 = arith.constant 0 : index
    %c0_104 = arith.constant 0 : index
    %105 = vector.load %arg15[%c0_102, %c0_103, %c0_104] : memref<8x16x32xf32, #tpu.memory_space<vmem>>, vector<8x16x32xf32>
    %c0_105 = arith.constant 0 : index
    %c0_106 = arith.constant 0 : index
    %106 = vector.load %arg8[%c0_105, %c0_106] : memref<1x32xf32, #tpu.memory_space<vmem>>, vector<1x32xf32>
    %107 = vector.shape_cast %106 : vector<1x32xf32> to vector<1x1x32xf32>
    %108 = vector.broadcast %107 : vector<1x1x32xf32> to vector<8x16x32xf32>
    %109 = arith.mulf %105, %108 : vector<8x16x32xf32>
    %c0_107 = arith.constant 0 : index
    %c0_108 = arith.constant 0 : index
    %110 = vector.load %arg9[%c0_107, %c0_108] : memref<1x32xf32, #tpu.memory_space<vmem>>, vector<1x32xf32>
    %111 = vector.shape_cast %110 : vector<1x32xf32> to vector<1x1x32xf32>
    %112 = vector.broadcast %111 : vector<1x1x32xf32> to vector<8x16x32xf32>
    %113 = arith.addf %109, %112 : vector<8x16x32xf32>
    %cst_109 = arith.constant 0.000000e+00 : f32
    %114 = vector.broadcast %cst_109 : f32 to vector<8x16x32xf32>
    %115 = arith.maximumf %113, %114 : vector<8x16x32xf32>
    %116 = vector.shape_cast %115 : vector<8x16x32xf32> to vector<128x32xf32>
    %117 = arith.truncf %116 : vector<128x32xf32> to vector<128x32xbf16>
    %c0_110 = arith.constant 0 : index
    %c0_111 = arith.constant 0 : index
    %118 = vector.load %arg10[%c0_110, %c0_111] : memref<32x128xbf16, #tpu.memory_space<vmem>>, vector<32x128xbf16>
    %cst_112 = arith.constant dense<0.000000e+00> : vector<128x128xf32>
    %119 = tpu.matmul %117, %118, %cst_112 {dimension_numbers = #tpu.dot_dimension_numbers<[1], [0], [0], [1], [0, 0, 1, 1], [], []>} : vector<128x32xbf16>, vector<32x128xbf16>, vector<128x128xf32> -> vector<128x128xf32>
    %c0_113 = arith.constant 0 : index
    %c0_114 = arith.constant 0 : index
    %120 = vector.load %arg11[%c0_113, %c0_114] : memref<1x128xf32, #tpu.memory_space<vmem>>, vector<1x128xf32>
    %121 = vector.broadcast %120 : vector<1x128xf32> to vector<128x128xf32>
    %122 = arith.mulf %119, %121 : vector<128x128xf32>
    %c0_115 = arith.constant 0 : index
    %c0_116 = arith.constant 0 : index
    %123 = vector.load %arg12[%c0_115, %c0_116] : memref<1x128xf32, #tpu.memory_space<vmem>>, vector<1x128xf32>
    %124 = vector.broadcast %123 : vector<1x128xf32> to vector<128x128xf32>
    %125 = arith.addf %122, %124 : vector<128x128xf32>
    %126 = vector.shape_cast %1 : vector<8x16x128xf32> to vector<128x128xf32>
    %127 = arith.addf %125, %126 : vector<128x128xf32>
    %cst_117 = arith.constant 0.000000e+00 : f32
    %128 = vector.broadcast %cst_117 : f32 to vector<128x128xf32>
    %129 = arith.maximumf %127, %128 : vector<128x128xf32>
    %130 = vector.shape_cast %129 : vector<128x128xf32> to vector<8x16x128xf32>
    %c0_118 = arith.constant 0 : index
    %c0_119 = arith.constant 0 : index
    %c0_120 = arith.constant 0 : index
    %c0_121 = arith.constant 0 : index
    %131 = vector.load %arg13[%c0_118, %c0_119, %c0_120, %c0_121] : memref<1x8x16x128xf32, #tpu.memory_space<vmem>>, vector<1x8x16x128xf32>
    %132 = vector.shape_cast %131 : vector<1x8x16x128xf32> to vector<8x16x128xf32>
    %133 = vector.shape_cast %130 : vector<8x16x128xf32> to vector<1x8x16x128xf32>
    tpu.vector_store %arg13[%c0_118, %c0_119, %c0_120, %c0_121], %133 {strides = array<i32>} : memref<1x8x16x128xf32, #tpu.memory_space<vmem>>, vector<1x8x16x128xf32>,
    return
  }
  func.func @transform_0(%arg0: i32, %arg1: i32) -> (i32, i32, i32, i32) {
    %c0_i32 = arith.constant 0 : i32
    %c0_i32_0 = arith.constant 0 : i32
    %c0_i32_1 = arith.constant 0 : i32
    return %arg0, %arg1, %c0_i32, %c0_i32_0 : i32, i32, i32, i32
  }
  func.func @transform_1(%arg0: i32, %arg1: i32) -> (i32, i32, i32, i32, i32) {
    %c0_i32 = arith.constant 0 : i32
    %c0_i32_0 = arith.constant 0 : i32
    %c0_i32_1 = arith.constant 0 : i32
    %c0_i32_2 = arith.constant 0 : i32
    return %arg0, %arg1, %c0_i32, %c0_i32_0, %c0_i32_1 : i32, i32, i32, i32, i32
  }
  func.func @transform_2(%arg0: i32, %arg1: i32) -> (i32, i32) {
    %c0_i32 = arith.constant 0 : i32
    %c0_i32_0 = arith.constant 0 : i32
    %c0_i32_1 = arith.constant 0 : i32
    return %c0_i32, %c0_i32_0 : i32, i32
  }
  func.func @transform_3(%arg0: i32, %arg1: i32) -> (i32, i32) {
    %c0_i32 = arith.constant 0 : i32
    %c0_i32_0 = arith.constant 0 : i32
    %c0_i32_1 = arith.constant 0 : i32
    return %c0_i32, %c0_i32_0 : i32, i32
  }
  func.func @transform_4(%arg0: i32, %arg1: i32) -> (i32, i32) {
    %c0_i32 = arith.constant 0 : i32
    %c0_i32_0 = arith.constant 0 : i32
    %c0_i32_1 = arith.constant 0 : i32
    return %c0_i32, %c0_i32_0 : i32, i32
  }
  func.func @transform_5(%arg0: i32, %arg1: i32) -> (i32, i32, i32) {
    %c0_i32 = arith.constant 0 : i32
    %c0_i32_0 = arith.constant 0 : i32
    %c0_i32_1 = arith.constant 0 : i32
    %c0_i32_2 = arith.constant 0 : i32
    return %c0_i32, %c0_i32_0, %c0_i32_1 : i32, i32, i32
  }
  func.func @transform_6(%arg0: i32, %arg1: i32) -> (i32, i32) {
    %c0_i32 = arith.constant 0 : i32
    %c0_i32_0 = arith.constant 0 : i32
    %c0_i32_1 = arith.constant 0 : i32
    return %c0_i32, %c0_i32_0 : i32, i32
  }
  func.func @transform_7(%arg0: i32, %arg1: i32) -> (i32, i32) {
    %c0_i32 = arith.constant 0 : i32
    %c0_i32_0 = arith.constant 0 : i32
    %c0_i32_1 = arith.constant 0 : i32
    return %c0_i32, %c0_i32_0 : i32, i32
  }
  func.func @transform_8(%arg0: i32, %arg1: i32) -> (i32, i32) {
    %c0_i32 = arith.constant 0 : i32
    %c0_i32_0 = arith.constant 0 : i32
    %c0_i32_1 = arith.constant 0 : i32
    return %c0_i32, %c0_i32_0 : i32, i32
  }
  func.func @transform_9(%arg0: i32, %arg1: i32) -> (i32, i32) {
    %c0_i32 = arith.constant 0 : i32
    %c0_i32_0 = arith.constant 0 : i32
    %c0_i32_1 = arith.constant 0 : i32
    return %c0_i32, %c0_i32_0 : i32, i32
  }
  func.func @transform_10(%arg0: i32, %arg1: i32) -> (i32, i32) {
    %c0_i32 = arith.constant 0 : i32
    %c0_i32_0 = arith.constant 0 : i32
    %c0_i32_1 = arith.constant 0 : i32
    return %c0_i32, %c0_i32_0 : i32, i32
  }
  func.func @transform_11(%arg0: i32, %arg1: i32) -> (i32, i32, i32, i32) {
    %c0_i32 = arith.constant 0 : i32
    %c0_i32_0 = arith.constant 0 : i32
    %c0_i32_1 = arith.constant 0 : i32
    return %arg0, %arg1, %c0_i32, %c0_i32_0 : i32, i32, i32, i32
  }
}

</mosaic_0001>

<llo_original>
// kernel: bottleneck_forward.1
$region0: #{bottleneck_forward.1}
  #allocation0 [shape = 'u32[]', space=smem, size = 0x4, offset = 0x4, fixed_abs, tag = 'smem constant byte address 0x4 - core index']
  #allocation1 [shape = 'u32[144,128]{1,0:T(1,128)}', space=vmem, size = 0x12000, scoped, tag = 'internal scratch']
  #allocation2 [shape = 'bf16[10,16,32]{2,1,0:T(16,128)(2,1)}', space=vmem, size = 0xa000, scoped, tag = 'scratch operand']
  #allocation3 [shape = 'f32[8,16,32]{2,1,0:T(8,128)}', space=vmem, size = 0x10000, scoped, tag = 'scratch operand']
  %s0 = inlined_call_operand.vmem [shape: f32[2,16,16,128], index: 0, kind: input, shape index: {}]
  %s1 = inlined_call_operand.vmem [shape: f32[2,2,2,16,128], index: 1, kind: input, shape index: {}]
  %s2 = inlined_call_operand.vmem [shape: bf16[128,32], index: 2, kind: input, shape index: {}]
  %s3 = inlined_call_operand.vmem [shape: f32[1,32], index: 3, kind: input, shape index: {}]
  %s4 = inlined_call_operand.vmem [shape: f32[1,32], index: 4, kind: input, shape index: {}]
  %s5 = inlined_call_operand.vmem [shape: bf16[3,32,96], index: 5, kind: input, shape index: {}]
  %s6 = inlined_call_operand.vmem [shape: f32[1,32], index: 6, kind: input, shape index: {}]
  %s7 = inlined_call_operand.vmem [shape: f32[1,32], index: 7, kind: input, shape index: {}]
  %s8 = inlined_call_operand.vmem [shape: bf16[32,128], index: 8, kind: input, shape index: {}]
  %s9 = inlined_call_operand.vmem [shape: f32[1,128], index: 9, kind: input, shape index: {}]
  %s10 = inlined_call_operand.vmem [shape: f32[1,128], index: 10, kind: input, shape index: {}]
  %s11 = inlined_call_operand.hbm [shape: f32[2,16,16,128], index: 11, kind: output, shape index: {}]
  %s12 = sld [smem:[#allocation0]]
  $region77: #{bottleneck_forward.1} parent=0
    _
  %s14 = ssub.s32 1, %s12
  %s15 = scalar_select 0, %s14, %s12
  $region1: #{bottleneck_forward.1} parent=0
    #allocation4 [shape = 'u8[131072]{0}', space=vmem, size = 0x20000, scoped, tag = 'output window, operand 0']
    #allocation5 [shape = 's32[2]{0}', space=sflag, size = 0x8, scoped, tag = 'scoped memory for bottleneck_forward.1']
    %16 = vsyncpa [#allocation5], 0
    %s17 = scalar_lea.sflag [#allocation5], 1
    %18 = vsyncpa %s17, 0
    loop: start=0, step=1, limit=6
    $region2: #{bottleneck_forward.1} parent=1 // loop_pre_header
      _
    $region3: #{bottleneck_forward.1} parent=1 // loop_header
      %s20 = sphi 0, %s24
      %p21 = scmp.ge.s32.totalorder %s20, 6
      %s27 = sphi 0, %s39
      %s28 = sphi 0, %s35
      %s29 = sphi 0, %s27
      %s30 = sphi 0, %s28
      %s31 = sphi 0, %s29
      %s32 = sphi 0, %s30
      %s44 = sphi 0, %s46
      %s47 = sphi 0, %s44
      %s48 = sphi 0, %s47
      %s64 = sphi 0, %s48
      %s72 = sphi 0, %s74
      %s75 = sphi 0, %s72
      %s76 = sphi 0, %s75
      %s92 = sphi 0, %s76
      %s96 = sphi 0, %s96
      %s98 = sphi 0, %s96
      %s99 = sphi 0, %s98
      %s113 = sphi 0, %s99
      %s117 = sphi 0, %s117
      %s119 = sphi 0, %s117
      %s120 = sphi 0, %s119
      %s134 = sphi 0, %s120
      %s138 = sphi 0, %s138
      %s140 = sphi 0, %s138
      %s141 = sphi 0, %s140
      %s155 = sphi 0, %s141
      %s159 = sphi 0, %s159
      %s161 = sphi 0, %s159
      %s162 = sphi 0, %s161
      %s176 = sphi 0, %s162
      %s180 = sphi 0, %s180
      %s182 = sphi 0, %s180
      %s183 = sphi 0, %s182
      %s197 = sphi 0, %s183
      %s201 = sphi 0, %s201
      %s203 = sphi 0, %s201
      %s204 = sphi 0, %s203
      %s218 = sphi 0, %s204
      %s222 = sphi 0, %s222
      %s224 = sphi 0, %s222
      %s225 = sphi 0, %s224
      %s239 = sphi 0, %s225
      %s243 = sphi 0, %s243
      %s245 = sphi 0, %s243
      %s246 = sphi 0, %s245
      %s260 = sphi 0, %s246
      %s264 = sphi 0, %s264
      %s266 = sphi 0, %s264
      %s267 = sphi 0, %s266
      %s281 = sphi 0, %s267
      %s289 = sphi 0, %s291
      %s292 = sphi 0, %s289
      %s293 = sphi 0, %s292
      %s309 = sphi 0, %s293
    $region4: #{bottleneck_forward.1} parent=1 // loop_header_branch
      %23 = sbr.rel (%p21) target = $region8
    $region5: #{bottleneck_forward.1} parent=1 // loop_body
      %s25 = ssub.s32 %s20, 1
      %s26 = ssub.s32 %s20, 2
      %s33 = sadd.s32 1, %s28
      %p34 = scmp.ge.s32.totalorder %s33, 2
      %s35 = scalar_select %p34, 0, %s33
      %s36 = sadd.s32 1, %s27
      %s37 = scalar_select %p34, %s36, %s27
      %p38 = scmp.ge.s32.totalorder %s37, 2
      %s39 = scalar_select %p38, 0, %s37
      %s40 = ssub.s32 %s27, %s39
      %s41 = ssub.s32 %s28, %s35
      %s42 = sor.u32 %s40, %s41
      %p43 = scmp.eq.s32.totalorder %s42, 0
      %s45 = sadd.s32 %s44, 1
      %s46 = scalar_select %p43, %s44, %s45
      %p49 = pneg %p43
      %p50 = scmp.eq.s32.totalorder %s20, 3
      %p51 = por %p49, %p50
      %p52 = scmp.ne.s32.totalorder %s44, %s47
      %p53 = scmp.eq.s32.totalorder %s20, 0
      %p54 = por %p52, %p53
      %p55 = scmp.ne.s32.totalorder %s44, %s47
      %p56 = scmp.eq.s32.totalorder %s25, 3
      %p57 = por %p55, %p56
      %p58 = scmp.ne.s32.totalorder %s47, %s48
      %p59 = scmp.eq.s32.totalorder %s25, 0
      %p60 = por %p58, %p59
      %p61 = scmp.ne.s32.totalorder %s47, %s48
      %p62 = scmp.eq.s32.totalorder %s26, 3
      %p63 = por %p61, %p62
      %p65 = scmp.ne.s32.totalorder %s48, %s64
      %p66 = scmp.eq.s32.totalorder %s26, 0
      %p67 = por %p65, %p66
      %s68 = ssub.s32 %s27, %s39
      %s69 = ssub.s32 %s28, %s35
      %s70 = sor.u32 %s68, %s69
      %p71 = scmp.eq.s32.totalorder %s70, 0
      %s73 = sadd.s32 %s72, 1
      %s74 = scalar_select %p71, %s72, %s73
      %p77 = pneg %p71
      %p78 = scmp.eq.s32.totalorder %s20, 3
      %p79 = por %p77, %p78
      %p80 = scmp.ne.s32.totalorder %s72, %s75
      %p81 = scmp.eq.s32.totalorder %s20, 0
      %p82 = por %p80, %p81
      %p83 = scmp.ne.s32.totalorder %s72, %s75
      %p84 = scmp.eq.s32.totalorder %s25, 3
      %p85 = por %p83, %p84
      %p86 = scmp.ne.s32.totalorder %s75, %s76
      %p87 = scmp.eq.s32.totalorder %s25, 0
      %p88 = por %p86, %p87
      %p89 = scmp.ne.s32.totalorder %s75, %s76
      %p90 = scmp.eq.s32.totalorder %s26, 3
      %p91 = por %p89, %p90
      %p93 = scmp.ne.s32.totalorder %s76, %s92
      %p94 = scmp.eq.s32.totalorder %s26, 0
      %p95 = por %p93, %p94
      %s97 = sadd.s32 %s96, 1
      %p100 = scmp.eq.s32.totalorder %s20, 3
      %p101 = scmp.ne.s32.totalorder %s96, %s98
      %p102 = scmp.eq.s32.totalorder %s20, 0
      %p103 = por %p101, %p102
      %p104 = scmp.ne.s32.totalorder %s96, %s98
      %p105 = scmp.eq.s32.totalorder %s25, 3
      %p106 = por %p104, %p105
      %p107 = scmp.ne.s32.totalorder %s98, %s99
      %p108 = scmp.eq.s32.totalorder %s25, 0
      %p109 = por %p107, %p108
      %p110 = scmp.ne.s32.totalorder %s98, %s99
      %p111 = scmp.eq.s32.totalorder %s26, 3
      %p112 = por %p110, %p111
      %p114 = scmp.ne.s32.totalorder %s99, %s113
      %p115 = scmp.eq.s32.totalorder %s26, 0
      %p116 = por %p114, %p115
      %s118 = sadd.s32 %s117, 1
      %p121 = scmp.eq.s32.totalorder %s20, 3
      %p122 = scmp.ne.s32.totalorder %s117, %s119
      %p123 = scmp.eq.s32.totalorder %s20, 0
      %p124 = por %p122, %p123
      %p125 = scmp.ne.s32.totalorder %s117, %s119
      %p126 = scmp.eq.s32.totalorder %s25, 3
      %p127 = por %p125, %p126
      %p128 = scmp.ne.s32.totalorder %s119, %s120
      %p129 = scmp.eq.s32.totalorder %s25, 0
      %p130 = por %p128, %p129
      %p131 = scmp.ne.s32.totalorder %s119, %s120
      %p132 = scmp.eq.s32.totalorder %s26, 3
      %p133 = por %p131, %p132
      %p135 = scmp.ne.s32.totalorder %s120, %s134
      %p136 = scmp.eq.s32.totalorder %s26, 0
      %p137 = por %p135, %p136
      %s139 = sadd.s32 %s138, 1
      %p142 = scmp.eq.s32.totalorder %s20, 3
      %p143 = scmp.ne.s32.totalorder %s138, %s140
      %p144 = scmp.eq.s32.totalorder %s20, 0
      %p145 = por %p143, %p144
      %p146 = scmp.ne.s32.totalorder %s138, %s140
      %p147 = scmp.eq.s32.totalorder %s25, 3
      %p148 = por %p146, %p147
      %p149 = scmp.ne.s32.totalorder %s140, %s141
      %p150 = scmp.eq.s32.totalorder %s25, 0
      %p151 = por %p149, %p150
      %p152 = scmp.ne.s32.totalorder %s140, %s141
      %p153 = scmp.eq.s32.totalorder %s26, 3
      %p154 = por %p152, %p153
      %p156 = scmp.ne.s32.totalorder %s141, %s155
      %p157 = scmp.eq.s32.totalorder %s26, 0
      %p158 = por %p156, %p157
      %s160 = sadd.s32 %s159, 1
      %p163 = scmp.eq.s32.totalorder %s20, 3
      %p164 = scmp.ne.s32.totalorder %s159, %s161
      %p165 = scmp.eq.s32.totalorder %s20, 0
      %p166 = por %p164, %p165
      %p167 = scmp.ne.s32.totalorder %s159, %s161
      %p168 = scmp.eq.s32.totalorder %s25, 3
      %p169 = por %p167, %p168
      %p170 = scmp.ne.s32.totalorder %s161, %s162
      %p171 = scmp.eq.s32.totalorder %s25, 0
      %p172 = por %p170, %p171
      %p173 = scmp.ne.s32.totalorder %s161, %s162
      %p174 = scmp.eq.s32.totalorder %s26, 3
      %p175 = por %p173, %p174
      %p177 = scmp.ne.s32.totalorder %s162, %s176
      %p178 = scmp.eq.s32.totalorder %s26, 0
      %p179 = por %p177, %p178
      %s181 = sadd.s32 %s180, 1
      %p184 = scmp.eq.s32.totalorder %s20, 3
      %p185 = scmp.ne.s32.totalorder %s180, %s182
      %p186 = scmp.eq.s32.totalorder %s20, 0
      %p187 = por %p185, %p186
      %p188 = scmp.ne.s32.totalorder %s180, %s182
      %p189 = scmp.eq.s32.totalorder %s25, 3
      %p190 = por %p188, %p189
      %p191 = scmp.ne.s32.totalorder %s182, %s183
      %p192 = scmp.eq.s32.totalorder %s25, 0
      %p193 = por %p191, %p192
      %p194 = scmp.ne.s32.totalorder %s182, %s183
      %p195 = scmp.eq.s32.totalorder %s26, 3
      %p196 = por %p194, %p195
      %p198 = scmp.ne.s32.totalorder %s183, %s197
      %p199 = scmp.eq.s32.totalorder %s26, 0
      %p200 = por %p198, %p199
      %s202 = sadd.s32 %s201, 1
      %p205 = scmp.eq.s32.totalorder %s20, 3
      %p206 = scmp.ne.s32.totalorder %s201, %s203
      %p207 = scmp.eq.s32.totalorder %s20, 0
      %p208 = por %p206, %p207
      %p209 = scmp.ne.s32.totalorder %s201, %s203
      %p210 = scmp.eq.s32.totalorder %s25, 3
      %p211 = por %p209, %p210
      %p212 = scmp.ne.s32.totalorder %s203, %s204
      %p213 = scmp.eq.s32.totalorder %s25, 0
      %p214 = por %p212, %p213
      %p215 = scmp.ne.s32.totalorder %s203, %s204
      %p216 = scmp.eq.s32.totalorder %s26, 3
      %p217 = por %p215, %p216
      %p219 = scmp.ne.s32.totalorder %s204, %s218
      %p220 = scmp.eq.s32.totalorder %s26, 0
      %p221 = por %p219, %p220
      %s223 = sadd.s32 %s222, 1
      %p226 = scmp.eq.s32.totalorder %s20, 3
      %p227 = scmp.ne.s32.totalorder %s222, %s224
      %p228 = scmp.eq.s32.totalorder %s20, 0
      %p229 = por %p227, %p228
      %p230 = scmp.ne.s32.totalorder %s222, %s224
      %p231 = scmp.eq.s32.totalorder %s25, 3
      %p232 = por %p230, %p231
      %p233 = scmp.ne.s32.totalorder %s224, %s225
      %p234 = scmp.eq.s32.totalorder %s25, 0
      %p235 = por %p233, %p234
      %p236 = scmp.ne.s32.totalorder %s224, %s225
      %p237 = scmp.eq.s32.totalorder %s26, 3
      %p238 = por %p236, %p237
      %p240 = scmp.ne.s32.totalorder %s225, %s239
      %p241 = scmp.eq.s32.totalorder %s26, 0
      %p242 = por %p240, %p241
      %s244 = sadd.s32 %s243, 1
      %p247 = scmp.eq.s32.totalorder %s20, 3
      %p248 = scmp.ne.s32.totalorder %s243, %s245
      %p249 = scmp.eq.s32.totalorder %s20, 0
      %p250 = por %p248, %p249
      %p251 = scmp.ne.s32.totalorder %s243, %s245
      %p252 = scmp.eq.s32.totalorder %s25, 3
      %p253 = por %p251, %p252
      %p254 = scmp.ne.s32.totalorder %s245, %s246
      %p255 = scmp.eq.s32.totalorder %s25, 0
      %p256 = por %p254, %p255
      %p257 = scmp.ne.s32.totalorder %s245, %s246
      %p258 = scmp.eq.s32.totalorder %s26, 3
      %p259 = por %p257, %p258
      %p261 = scmp.ne.s32.totalorder %s246, %s260
      %p262 = scmp.eq.s32.totalorder %s26, 0
      %p263 = por %p261, %p262
      %s265 = sadd.s32 %s264, 1
      %p268 = scmp.eq.s32.totalorder %s20, 3
      %p269 = scmp.ne.s32.totalorder %s264, %s266
      %p270 = scmp.eq.s32.totalorder %s20, 0
      %p271 = por %p269, %p270
      %p272 = scmp.ne.s32.totalorder %s264, %s266
      %p273 = scmp.eq.s32.totalorder %s25, 3
      %p274 = por %p272, %p273
      %p275 = scmp.ne.s32.totalorder %s266, %s267
      %p276 = scmp.eq.s32.totalorder %s25, 0
      %p277 = por %p275, %p276
      %p278 = scmp.ne.s32.totalorder %s266, %s267
      %p279 = scmp.eq.s32.totalorder %s26, 3
      %p280 = por %p278, %p279
      %p282 = scmp.ne.s32.totalorder %s267, %s281
      %p283 = scmp.eq.s32.totalorder %s26, 0
      %p284 = por %p282, %p283
      %s285 = ssub.s32 %s27, %s39
      %s286 = ssub.s32 %s28, %s35
      %s287 = sor.u32 %s285, %s286
      %p288 = scmp.eq.s32.totalorder %s287, 0
      %s290 = sadd.s32 %s289, 1
      %s291 = scalar_select %p288, %s289, %s290
      %p294 = pneg %p288
      %p295 = scmp.eq.s32.totalorder %s20, 3
      %p296 = por %p294, %p295
      %p297 = scmp.ne.s32.totalorder %s289, %s292
      %p298 = scmp.eq.s32.totalorder %s20, 0
      %p299 = por %p297, %p298
      %p300 = scmp.ne.s32.totalorder %s289, %s292
      %p301 = scmp.eq.s32.totalorder %s25, 3
      %p302 = por %p300, %p301
      %p303 = scmp.ne.s32.totalorder %s292, %s293
      %p304 = scmp.eq.s32.totalorder %s25, 0
      %p305 = por %p303, %p304
      %p306 = scmp.ne.s32.totalorder %s292, %s293
      %p307 = scmp.eq.s32.totalorder %s26, 3
      %p308 = por %p306, %p307
      %p310 = scmp.ne.s32.totalorder %s293, %s309
      %p311 = scmp.eq.s32.totalorder %s26, 0
      %p312 = por %p310, %p311
      %p313 = scmp.le.s32.totalorder 1, %s20
      %p314 = scmp.lt.s32.totalorder %s20, 5
      %p315 = pnand %p313, %p314
      %p316 = pneg %p315
      // Predicated region
      $region9: #{bottleneck_forward.1} parent=5 // pred_check
        _
      $region10: #{bottleneck_forward.1} parent=5 // pred_check_branch
        %318 = sbr.rel (%p315) target = $region12
      $region11: #{bottleneck_forward.1} parent=5 // pred_region
        %s319 = ssub.s32 %s20, 1
        // Predicated region
        $region13: #{bottleneck_forward.1} parent=11 // pred_check
          %p320 = pneg %p109
        $region14: #{bottleneck_forward.1} parent=11 // pred_check_branch
          %322 = sbr.rel (%p320) target = $region16
        $region15: #{bottleneck_forward.1} parent=11 // pred_region
          _
        $region16: #{bottleneck_forward.1} parent=11 // pred_fallthru
          _
        // Predicated region
        $region17: #{bottleneck_forward.1} parent=11 // pred_check
          %p323 = pneg %p130
        $region18: #{bottleneck_forward.1} parent=11 // pred_check_branch
          %325 = sbr.rel (%p323) target = $region20
        $region19: #{bottleneck_forward.1} parent=11 // pred_region
          _
        $region20: #{bottleneck_forward.1} parent=11 // pred_fallthru
          _
        // Predicated region
        $region21: #{bottleneck_forward.1} parent=11 // pred_check
          %p326 = pneg %p151
        $region22: #{bottleneck_forward.1} parent=11 // pred_check_branch
          %328 = sbr.rel (%p326) target = $region24
        $region23: #{bottleneck_forward.1} parent=11 // pred_region
          _
        $region24: #{bottleneck_forward.1} parent=11 // pred_fallthru
          _
        // Predicated region
        $region25: #{bottleneck_forward.1} parent=11 // pred_check
          %p329 = pneg %p172
        $region26: #{bottleneck_forward.1} parent=11 // pred_check_branch
          %331 = sbr.rel (%p329) target = $region28
        $region27: #{bottleneck_forward.1} parent=11 // pred_region
          _
        $region28: #{bottleneck_forward.1} parent=11 // pred_fallthru
          _
        // Predicated region
        $region29: #{bottleneck_forward.1} parent=11 // pred_check
          %p332 = pneg %p193
        $region30: #{bottleneck_forward.1} parent=11 // pred_check_branch
          %334 = sbr.rel (%p332) target = $region32
        $region31: #{bottleneck_forward.1} parent=11 // pred_region
          _
        $region32: #{bottleneck_forward.1} parent=11 // pred_fallthru
          _
        // Predicated region
        $region33: #{bottleneck_forward.1} parent=11 // pred_check
          %p335 = pneg %p214
        $region34: #{bottleneck_forward.1} parent=11 // pred_check_branch
          %337 = sbr.rel (%p335) target = $region36
        $region35: #{bottleneck_forward.1} parent=11 // pred_region
          _
        $region36: #{bottleneck_forward.1} parent=11 // pred_fallthru
          _
        // Predicated region
        $region37: #{bottleneck_forward.1} parent=11 // pred_check
          %p338 = pneg %p235
        $region38: #{bottleneck_forward.1} parent=11 // pred_check_branch
          %340 = sbr.rel (%p338) target = $region40
        $region39: #{bottleneck_forward.1} parent=11 // pred_region
          _
        $region40: #{bottleneck_forward.1} parent=11 // pred_fallthru
          _
        // Predicated region
        $region41: #{bottleneck_forward.1} parent=11 // pred_check
          %p341 = pneg %p256
        $region42: #{bottleneck_forward.1} parent=11 // pred_check_branch
          %343 = sbr.rel (%p341) target = $region44
        $region43: #{bottleneck_forward.1} parent=11 // pred_region
          _
        $region44: #{bottleneck_forward.1} parent=11 // pred_fallthru
          _
        // Predicated region
        $region45: #{bottleneck_forward.1} parent=11 // pred_check
          %p344 = pneg %p277
        $region46: #{bottleneck_forward.1} parent=11 // pred_check_branch
          %346 = sbr.rel (%p344) target = $region48
        $region47: #{bottleneck_forward.1} parent=11 // pred_region
          _
        $region48: #{bottleneck_forward.1} parent=11 // pred_fallthru
          _
      $region12: #{bottleneck_forward.1} parent=5 // pred_fallthru
        _
      %p347 = scmp.lt.s32.totalorder %s20, 4
      // Predicated region
      $region49: #{bottleneck_forward.1} parent=5 // pred_check
        %p348 = pneg %p347
      $region50: #{bottleneck_forward.1} parent=5 // pred_check_branch
        %350 = sbr.rel (%p348) target = $region52
      $region51: #{bottleneck_forward.1} parent=5 // pred_region
        // Predicated region
        $region53: #{bottleneck_forward.1} parent=51 // pred_check
          %p351 = pneg %p54
        $region54: #{bottleneck_forward.1} parent=51 // pred_check_branch
          %353 = sbr.rel (%p351) target = $region56
        $region55: #{bottleneck_forward.1} parent=51 // pred_region
          %s354 = smul.u32 8, %s28
          %p355 = scmp.lt.s32.totalorder %s27, 1
          %s356 = scalar_select %p355, %s27, 1
          %p357 = scmp.lt.s32.totalorder %s354, 15
          %s358 = scalar_select %p357, %s354, 15
          %s359 = smul.addr %s358, 2
          %s360 = smul.addr %s356, 32
          %s361 = sadd.s32 %s359, %s360
          %s362 = smul.addr %s361, 8
          %s363 = scalar_lea.vmem %s0, %s362
          %s364 = smul.u32 8, %s28
        $region56: #{bottleneck_forward.1} parent=51 // pred_fallthru
          _
        // Predicated region
        $region57: #{bottleneck_forward.1} parent=51 // pred_check
          %p365 = pneg %p82
        $region58: #{bottleneck_forward.1} parent=51 // pred_check_branch
          %367 = sbr.rel (%p365) target = $region60
        $region59: #{bottleneck_forward.1} parent=51 // pred_region
          %p368 = scmp.lt.s32.totalorder %s27, 1
          %s369 = scalar_select %p368, %s27, 1
          %p370 = scmp.lt.s32.totalorder %s28, 1
          %s371 = scalar_select %p370, %s28, 1
          %s372 = smul.addr %s371, 4
          %s373 = smul.addr %s369, 8
          %s374 = sadd.s32 %s372, %s373
          %s375 = smul.addr %s374, 8
          %s376 = scalar_lea.vmem %s1, %s375
        $region60: #{bottleneck_forward.1} parent=51 // pred_fallthru
          _
      $region52: #{bottleneck_forward.1} parent=5 // pred_fallthru
        _
      %p377 = scmp.le.s32.totalorder 1, %s20
      %p378 = scmp.lt.s32.totalorder %s20, 5
      %p379 = pnand %p377, %p378
      %p380 = pneg %p379
      // Predicated region
      $region61: #{bottleneck_forward.1} parent=5 // pred_check
        _
      $region62: #{bottleneck_forward.1} parent=5 // pred_check_branch
        %382 = sbr.rel (%p379) target = $region64
      $region63: #{bottleneck_forward.1} parent=5 // pred_region
        %s383 = ssub.s32 %s20, 1
        %s384 = smul.u32 8, %s30
        %p385 = scmp.lt.s32.totalorder %s29, 1
        %s386 = scalar_select %p385, %s29, 1
        %p387 = scmp.lt.s32.totalorder %s384, 15
        %s388 = scalar_select %p387, %s384, 15
        %s389 = smul.addr %s388, 2
        %s390 = smul.addr %s386, 32
        %s391 = sadd.s32 %s389, %s390
        %s392 = smul.addr %s391, 8
        %s393 = scalar_lea.vmem %s0, %s392
        %p394 = pneg %p60
        %p395 = pneg %p57
        %p396 = scmp.lt.s32.totalorder %s29, 1
        %s397 = scalar_select %p396, %s29, 1
        %p398 = scmp.lt.s32.totalorder %s30, 1
        %s399 = scalar_select %p398, %s30, 1
        %s400 = smul.addr %s399, 4
        %s401 = smul.addr %s397, 8
        %s402 = sadd.s32 %s400, %s401
        %s403 = smul.addr %s402, 8
        %s404 = scalar_lea.vmem %s1, %s403
        %p405 = pneg %p88
        %p406 = pneg %p85
        %p407 = pneg %p109
        %p408 = pneg %p106
        %p409 = pneg %p130
        %p410 = pneg %p127
        %p411 = pneg %p151
        %p412 = pneg %p148
        %p413 = pneg %p172
        %p414 = pneg %p169
        %p415 = pneg %p193
        %p416 = pneg %p190
        %p417 = pneg %p214
        %p418 = pneg %p211
        %p419 = pneg %p235
        %p420 = pneg %p232
        %p421 = pneg %p256
        %p422 = pneg %p253
        %p423 = pneg %p277
        %p424 = pneg %p274
        %p425 = pneg %p305
        %p426 = pneg %p302
        %s427 = sand.u32 %s292, 1
        %s428 = scalar_lea.sflag [#allocation5], %s427
        %s429 = sand.u32 %s292, 1
        %s430 = smul.addr %s429, 128
        %s431 = scalar_lea.vmem [#allocation4], %s430
        %s432 = smul.u32 8, %s30
        %p433 = scmp.lt.s32.totalorder %s29, 1
        %s434 = scalar_select %p433, %s29, 1
        %p435 = scmp.lt.s32.totalorder %s432, 15
        %s436 = scalar_select %p435, %s432, 15
        %s437 = smul.addr %s436, 2
        %s438 = smul.addr %s434, 32
        %s439 = sadd.s32 %s437, %s438
        %s440 = smul.addr %s439, 8
        %s441 = scalar_lea.vmem %s0, %s440
        %s442 = smul.u32 8, %s30
        %p443 = scmp.lt.s32.totalorder %s29, 1
        %s444 = scalar_select %p443, %s29, 1
        %p445 = scmp.lt.s32.totalorder %s30, 1
        %s446 = scalar_select %p445, %s30, 1
        %s447 = smul.addr %s446, 4
        %s448 = smul.addr %s444, 8
        %s449 = sadd.s32 %s447, %s448
        %s450 = smul.addr %s449, 8
        %s451 = scalar_lea.vmem %s1, %s450
        %s452 = smul.u32 8, %s30
        %v454 = vld [vmem:[%s441] sm:$0xff]
        %v455 = vld [vmem:[%s441 + $0x8] sm:$0xff]
        %v456 = vld [vmem:[%s441 + $0x10] sm:$0xff]
        %v457 = vld [vmem:[%s441 + $0x18] sm:$0xff]
        %v458 = vld [vmem:[%s441 + $0x20] sm:$0xff]
        %v459 = vld [vmem:[%s441 + $0x28] sm:$0xff]
        %v460 = vld [vmem:[%s441 + $0x30] sm:$0xff]
        %v461 = vld [vmem:[%s441 + $0x38] sm:$0xff]
        %v462 = vld [vmem:[%s441 + $0x40] sm:$0xff]
        %v463 = vld [vmem:[%s441 + $0x48] sm:$0xff]
        %v464 = vld [vmem:[%s441 + $0x50] sm:$0xff]
        %v465 = vld [vmem:[%s441 + $0x58] sm:$0xff]
        %v466 = vld [vmem:[%s441 + $0x60] sm:$0xff]
        %v467 = vld [vmem:[%s441 + $0x68] sm:$0xff]
        %v468 = vld [vmem:[%s441 + $0x70] sm:$0xff]
        %v469 = vld [vmem:[%s441 + $0x78] sm:$0xff]
        %v470 = vpack.c.bf16 %v455, %v454
        %v471 = vpack.c.bf16 %v457, %v456
        %v472 = vpack.c.bf16 %v459, %v458
        %v473 = vpack.c.bf16 %v461, %v460
        %v474 = vpack.c.bf16 %v463, %v462
        %v475 = vpack.c.bf16 %v465, %v464
        %v476 = vpack.c.bf16 %v467, %v466
        %v477 = vpack.c.bf16 %v469, %v468
        %v478 = vld [vmem:[%s2] sm:$0xf]
        %v479 = vld [vmem:[%s2 + $0x4] sm:$0xf]
        %v480 = vld [vmem:[%s2 + $0x8] sm:$0xf]
        %v481 = vld [vmem:[%s2 + $0xc] sm:$0xf]
        %v482 = vld [vmem:[%s2 + $0x10] sm:$0xf]
        %v483 = vld [vmem:[%s2 + $0x14] sm:$0xf]
        %v484 = vld [vmem:[%s2 + $0x18] sm:$0xf]
        %v485 = vld [vmem:[%s2 + $0x1c] sm:$0xf]
        %v486 = vld [vmem:[%s2 + $0x20] sm:$0xf]
        %v487 = vld [vmem:[%s2 + $0x24] sm:$0xf]
        %v488 = vld [vmem:[%s2 + $0x28] sm:$0xf]
        %v489 = vld [vmem:[%s2 + $0x2c] sm:$0xf]
        %v490 = vld [vmem:[%s2 + $0x30] sm:$0xf]
        %v491 = vld [vmem:[%s2 + $0x34] sm:$0xf]
        %v492 = vld [vmem:[%s2 + $0x38] sm:$0xf]
        %v493 = vld [vmem:[%s2 + $0x3c] sm:$0xf]
        %v510 = vunpack.c.l.b16 %v478
        %v511 = vunpack.c.l.b16 %v479
        %v512 = vunpack.c.l.b16 %v480
        %v513 = vunpack.c.l.b16 %v481
        %v514 = vunpack.c.l.b16 %v482
        %v515 = vunpack.c.l.b16 %v483
        %v516 = vunpack.c.l.b16 %v484
        %v517 = vunpack.c.l.b16 %v485
        %v518 = vunpack.c.l.b16 %v486
        %v519 = vunpack.c.l.b16 %v487
        %v520 = vunpack.c.l.b16 %v488
        %v521 = vunpack.c.l.b16 %v489
        %v522 = vunpack.c.l.b16 %v490
        %v523 = vunpack.c.l.b16 %v491
        %v524 = vunpack.c.l.b16 %v492
        %v525 = vunpack.c.l.b16 %v493
        %v526 = vpack.c.b16 %v511, %v510
        %v527 = vpack.c.b16 %v513, %v512
        %v528 = vpack.c.b16 %v515, %v514
        %v529 = vpack.c.b16 %v517, %v516
        %v530 = vpack.c.b16 %v519, %v518
        %v531 = vpack.c.b16 %v521, %v520
        %v532 = vpack.c.b16 %v523, %v522
        %v533 = vpack.c.b16 %v525, %v524
        %542 = vmatprep.subr.bf16.mxu0 0
        %543 = vmatpush1.bf16.msra.mxu0 %v526
        %544 = vmatprep.subr.bf16.mxu0 0
        %545 = vmatpush1.bf16.msra.mxu0 %v527
        %546 = vmatprep.subr.bf16.mxu0 0
        %547 = vmatpush1.bf16.msra.mxu0 %v528
        %548 = vmatprep.subr.bf16.mxu0 0
        %549 = vmatpush1.bf16.msra.mxu0 %v529
        %550 = vmatprep.subr.bf16.mxu0 0
        %551 = vmatpush1.bf16.msra.mxu0 %v530
        %552 = vmatprep.subr.bf16.mxu0 0
        %553 = vmatpush1.bf16.msra.mxu0 %v531
        %554 = vmatprep.subr.bf16.mxu0 0
        %555 = vmatpush1.bf16.msra.mxu0 %v532
        %556 = vmatprep.subr.bf16.mxu0 0
        %557 = vmatpush1.bf16.msra.mxu0 %v533
        %558 = vmatprep.subr.bf16.mxu0 0
        %559 = vmatpush1.bf16.msra.mxu0 0
        %560 = vmatprep.subr.bf16.mxu0 0
        %561 = vmatpush1.bf16.msra.mxu0 0
        %562 = vmatprep.subr.bf16.mxu0 0
        %563 = vmatpush1.bf16.msra.mxu0 0
        %564 = vmatprep.subr.bf16.mxu0 0
        %565 = vmatpush1.bf16.msra.mxu0 0
        %566 = vmatprep.subr.bf16.mxu0 0
        %567 = vmatpush1.bf16.msra.mxu0 0
        %568 = vmatprep.subr.bf16.mxu0 0
        %569 = vmatpush1.bf16.msra.mxu0 0
        %570 = vmatprep.subr.bf16.mxu0 0
        %571 = vmatpush1.bf16.msra.mxu0 0
        %572 = vmatprep.subr.bf16.mxu0 0
        %573 = vmatpush1.bf16.msra.mxu0 0
        %574 = vmatprep.mubr.bf16.mxu0 0
        %575 = vmatmul.mubr.bf16.gmra.mrb[0].mxu0 %v470
        %v576 = vpop.f32.mrb[0].mxu0
        %v577 = vadd.f32 0.0, %v576
        %v578 = vpop.f32.mrb[0].mxu0
        %v579 = vpop.f32.mrb[0].mxu0
        %v580 = vadd.f32 0.0, %v579
        %v581 = vpop.f32.mrb[0].mxu0
        %582 = vmatprep.mubr.bf16.mxu0 0
        %583 = vmatmul.mubr.bf16.gmra.mrb[0].mxu0 %v471
        %v584 = vpop.f32.mrb[0].mxu0
        %v585 = vadd.f32 0.0, %v584
        %v586 = vpop.f32.mrb[0].mxu0
        %v587 = vpop.f32.mrb[0].mxu0
        %v588 = vadd.f32 0.0, %v587
        %v589 = vpop.f32.mrb[0].mxu0
        %590 = vmatprep.mubr.bf16.mxu0 0
        %591 = vmatmul.mubr.bf16.gmra.mrb[0].mxu0 %v472
        %v592 = vpop.f32.mrb[0].mxu0
        %v593 = vadd.f32 0.0, %v592
        %v594 = vpop.f32.mrb[0].mxu0
        %v595 = vpop.f32.mrb[0].mxu0
        %v596 = vadd.f32 0.0, %v595
        %v597 = vpop.f32.mrb[0].mxu0
        %598 = vmatprep.mubr.bf16.mxu0 0
        %599 = vmatmul.mubr.bf16.gmra.mrb[0].mxu0 %v473
        %v600 = vpop.f32.mrb[0].mxu0
        %v601 = vadd.f32 0.0, %v600
        %v602 = vpop.f32.mrb[0].mxu0
        %v603 = vpop.f32.mrb[0].mxu0
        %v604 = vadd.f32 0.0, %v603
        %v605 = vpop.f32.mrb[0].mxu0
        %606 = vmatprep.mubr.bf16.mxu0 0
        %607 = vmatmul.mubr.bf16.gmra.mrb[0].mxu0 %v474
        %v608 = vpop.f32.mrb[0].mxu0
        %v609 = vadd.f32 0.0, %v608
        %v610 = vpop.f32.mrb[0].mxu0
        %v611 = vpop.f32.mrb[0].mxu0
        %v612 = vadd.f32 0.0, %v611
        %v613 = vpop.f32.mrb[0].mxu0
        %614 = vmatprep.mubr.bf16.mxu0 0
        %615 = vmatmul.mubr.bf16.gmra.mrb[0].mxu0 %v475
        %v616 = vpop.f32.mrb[0].mxu0
        %v617 = vadd.f32 0.0, %v616
        %v618 = vpop.f32.mrb[0].mxu0
        %v619 = vpop.f32.mrb[0].mxu0
        %v620 = vadd.f32 0.0, %v619
        %v621 = vpop.f32.mrb[0].mxu0
        %622 = vmatprep.mubr.bf16.mxu0 0
        %623 = vmatmul.mubr.bf16.gmra.mrb[0].mxu0 %v476
        %v624 = vpop.f32.mrb[0].mxu0
        %v625 = vadd.f32 0.0, %v624
        %v626 = vpop.f32.mrb[0].mxu0
        %v627 = vpop.f32.mrb[0].mxu0
        %v628 = vadd.f32 0.0, %v627
        %v629 = vpop.f32.mrb[0].mxu0
        %630 = vmatprep.mubr.bf16.mxu0 0
        %631 = vmatmul.mubr.bf16.gmra.mrb[0].mxu0 %v477
        %v632 = vpop.f32.mrb[0].mxu0
        %v633 = vadd.f32 0.0, %v632
        %v634 = vpop.f32.mrb[0].mxu0
        %v635 = vpop.f32.mrb[0].mxu0
        %v636 = vadd.f32 0.0, %v635
        %v637 = vpop.f32.mrb[0].mxu0
        %638 = vdwg.mxu0
        %v639 = vld [vmem:[%s3] sm:$0x1]
        %v641 = vlaneseq
        %v642 = vshrl.u32 %v641, 7
        %v643 = vsub.s32 0, %v642
        %v644 = vrot.slane %v639, %v643
        %v646 = vmul.f32 %v577, %v644
        %v647 = vmul.f32 %v580, %v644
        %v648 = vmul.f32 %v585, %v644
        %v649 = vmul.f32 %v588, %v644
        %v650 = vmul.f32 %v593, %v644
        %v651 = vmul.f32 %v596, %v644
        %v652 = vmul.f32 %v601, %v644
        %v653 = vmul.f32 %v604, %v644
        %v654 = vmul.f32 %v609, %v644
        %v655 = vmul.f32 %v612, %v644
        %v656 = vmul.f32 %v617, %v644
        %v657 = vmul.f32 %v620, %v644
        %v658 = vmul.f32 %v625, %v644
        %v659 = vmul.f32 %v628, %v644
        %v660 = vmul.f32 %v633, %v644
        %v661 = vmul.f32 %v636, %v644
        %v662 = vld [vmem:[%s4] sm:$0x1]
        %v664 = vlaneseq
        %v665 = vshrl.u32 %v664, 7
        %v666 = vsub.s32 0, %v665
        %v667 = vrot.slane %v662, %v666
        %v669 = vadd.f32 %v646, %v667
        %v670 = vadd.f32 %v647, %v667
        %v671 = vadd.f32 %v648, %v667
        %v672 = vadd.f32 %v649, %v667
        %v673 = vadd.f32 %v650, %v667
        %v674 = vadd.f32 %v651, %v667
        %v675 = vadd.f32 %v652, %v667
        %v676 = vadd.f32 %v653, %v667
        %v677 = vadd.f32 %v654, %v667
        %v678 = vadd.f32 %v655, %v667
        %v679 = vadd.f32 %v656, %v667
        %v680 = vadd.f32 %v657, %v667
        %v681 = vadd.f32 %v658, %v667
        %v682 = vadd.f32 %v659, %v667
        %v683 = vadd.f32 %v660, %v667
        %v684 = vadd.f32 %v661, %v667
        %v685 = vmax.f32 %v669, 0.0
        %v686 = vmax.f32 %v670, 0.0
        %v687 = vmax.f32 %v671, 0.0
        %v688 = vmax.f32 %v672, 0.0
        %v689 = vmax.f32 %v673, 0.0
        %v690 = vmax.f32 %v674, 0.0
        %v691 = vmax.f32 %v675, 0.0
        %v692 = vmax.f32 %v676, 0.0
        %v693 = vmax.f32 %v677, 0.0
        %v694 = vmax.f32 %v678, 0.0
        %v695 = vmax.f32 %v679, 0.0
        %v696 = vmax.f32 %v680, 0.0
        %v697 = vmax.f32 %v681, 0.0
        %v698 = vmax.f32 %v682, 0.0
        %v699 = vmax.f32 %v683, 0.0
        %v700 = vmax.f32 %v684, 0.0
        %v701 = vpack.c.bf16 %v686, %v685
        %v702 = vpack.c.bf16 %v688, %v687
        %v703 = vpack.c.bf16 %v690, %v689
        %v704 = vpack.c.bf16 %v692, %v691
        %v705 = vpack.c.bf16 %v694, %v693
        %v706 = vpack.c.bf16 %v696, %v695
        %v707 = vpack.c.bf16 %v698, %v697
        %v708 = vpack.c.bf16 %v700, %v699
        %s709 = scalar_lea.vmem [#allocation2], 8
        %vm710 = vcmask 261120
        %711 = vst.msk [vmem:[%s709] sm:$0xff] %vm710, %v701
        %712 = vst.msk [vmem:[%s709 + $0x8] sm:$0xff] %vm710, %v702
        %713 = vst.msk [vmem:[%s709 + $0x10] sm:$0xff] %vm710, %v703
        %714 = vst.msk [vmem:[%s709 + $0x18] sm:$0xff] %vm710, %v704
        %715 = vst.msk [vmem:[%s709 + $0x20] sm:$0xff] %vm710, %v705
        %716 = vst.msk [vmem:[%s709 + $0x28] sm:$0xff] %vm710, %v706
        %717 = vst.msk [vmem:[%s709 + $0x30] sm:$0xff] %vm710, %v707
        %718 = vst.msk [vmem:[%s709 + $0x38] sm:$0xff] %vm710, %v708
        %v719 = vld [vmem:[%s451] sm:$0xff]
        %v720 = vld [vmem:[%s451 + $0x8] sm:$0xff]
        %v721 = vld [vmem:[%s451 + $0x10] sm:$0xff]
        %v722 = vld [vmem:[%s451 + $0x18] sm:$0xff]
        %v723 = vpack.c.bf16 %v720, %v719
        %v724 = vpack.c.bf16 %v722, %v721
        %v725 = vld [vmem:[%s2] sm:$0xf]
        %v726 = vld [vmem:[%s2 + $0x4] sm:$0xf]
        %v727 = vld [vmem:[%s2 + $0x8] sm:$0xf]
        %v728 = vld [vmem:[%s2 + $0xc] sm:$0xf]
        %v729 = vld [vmem:[%s2 + $0x10] sm:$0xf]
        %v730 = vld [vmem:[%s2 + $0x14] sm:$0xf]
        %v731 = vld [vmem:[%s2 + $0x18] sm:$0xf]
        %v732 = vld [vmem:[%s2 + $0x1c] sm:$0xf]
        %v733 = vld [vmem:[%s2 + $0x20] sm:$0xf]
        %v734 = vld [vmem:[%s2 + $0x24] sm:$0xf]
        %v735 = vld [vmem:[%s2 + $0x28] sm:$0xf]
        %v736 = vld [vmem:[%s2 + $0x2c] sm:$0xf]
        %v737 = vld [vmem:[%s2 + $0x30] sm:$0xf]
        %v738 = vld [vmem:[%s2 + $0x34] sm:$0xf]
        %v739 = vld [vmem:[%s2 + $0x38] sm:$0xf]
        %v740 = vld [vmem:[%s2 + $0x3c] sm:$0xf]
        %v757 = vunpack.c.l.b16 %v725
        %v758 = vunpack.c.l.b16 %v726
        %v759 = vunpack.c.l.b16 %v727
        %v760 = vunpack.c.l.b16 %v728
        %v761 = vunpack.c.l.b16 %v729
        %v762 = vunpack.c.l.b16 %v730
        %v763 = vunpack.c.l.b16 %v731
        %v764 = vunpack.c.l.b16 %v732
        %v765 = vunpack.c.l.b16 %v733
        %v766 = vunpack.c.l.b16 %v734
        %v767 = vunpack.c.l.b16 %v735
        %v768 = vunpack.c.l.b16 %v736
        %v769 = vunpack.c.l.b16 %v737
        %v770 = vunpack.c.l.b16 %v738
        %v771 = vunpack.c.l.b16 %v739
        %v772 = vunpack.c.l.b16 %v740
        %v773 = vpack.c.b16 %v758, %v757
        %v774 = vpack.c.b16 %v760, %v759
        %v775 = vpack.c.b16 %v762, %v761
        %v776 = vpack.c.b16 %v764, %v763
        %v777 = vpack.c.b16 %v766, %v765
        %v778 = vpack.c.b16 %v768, %v767
        %v779 = vpack.c.b16 %v770, %v769
        %v780 = vpack.c.b16 %v772, %v771
        %789 = vmatprep.subr.bf16.mxu0 0
        %790 = vmatpush1.bf16.msra.mxu0 %v773
        %791 = vmatprep.subr.bf16.mxu0 0
        %792 = vmatpush1.bf16.msra.mxu0 %v774
        %793 = vmatprep.subr.bf16.mxu0 0
        %794 = vmatpush1.bf16.msra.mxu0 %v775
        %795 = vmatprep.subr.bf16.mxu0 0
        %796 = vmatpush1.bf16.msra.mxu0 %v776
        %797 = vmatprep.subr.bf16.mxu0 0
        %798 = vmatpush1.bf16.msra.mxu0 %v777
        %799 = vmatprep.subr.bf16.mxu0 0
        %800 = vmatpush1.bf16.msra.mxu0 %v778
        %801 = vmatprep.subr.bf16.mxu0 0
        %802 = vmatpush1.bf16.msra.mxu0 %v779
        %803 = vmatprep.subr.bf16.mxu0 0
        %804 = vmatpush1.bf16.msra.mxu0 %v780
        %805 = vmatprep.subr.bf16.mxu0 0
        %806 = vmatpush1.bf16.msra.mxu0 0
        %807 = vmatprep.subr.bf16.mxu0 0
        %808 = vmatpush1.bf16.msra.mxu0 0
        %809 = vmatprep.subr.bf16.mxu0 0
        %810 = vmatpush1.bf16.msra.mxu0 0
        %811 = vmatprep.subr.bf16.mxu0 0
        %812 = vmatpush1.bf16.msra.mxu0 0
        %813 = vmatprep.subr.bf16.mxu0 0
        %814 = vmatpush1.bf16.msra.mxu0 0
        %815 = vmatprep.subr.bf16.mxu0 0
        %816 = vmatpush1.bf16.msra.mxu0 0
        %817 = vmatprep.subr.bf16.mxu0 0
        %818 = vmatpush1.bf16.msra.mxu0 0
        %819 = vmatprep.subr.bf16.mxu0 0
        %820 = vmatpush1.bf16.msra.mxu0 0
        %821 = vmatprep.mubr.bf16.mxu0 0
        %822 = vmatmul.mubr.bf16.gmra.mrb[0].mxu0 %v723
        %v823 = vpop.f32.mrb[0].mxu0
        %v824 = vadd.f32 0.0, %v823
        %v825 = vpop.f32.mrb[0].mxu0
        %v826 = vpop.f32.mrb[0].mxu0
        %v827 = vadd.f32 0.0, %v826
        %v828 = vpop.f32.mrb[0].mxu0
        %829 = vmatprep.mubr.bf16.mxu0 0
        %830 = vmatmul.mubr.bf16.gmra.mrb[0].mxu0 %v724
        %v831 = vpop.f32.mrb[0].mxu0
        %v832 = vadd.f32 0.0, %v831
        %v833 = vpop.f32.mrb[0].mxu0
        %v834 = vpop.f32.mrb[0].mxu0
        %v835 = vadd.f32 0.0, %v834
        %v836 = vpop.f32.mrb[0].mxu0
        %837 = vdwg.mxu0
        %v838 = vld [vmem:[%s3] sm:$0x1]
        %v840 = vlaneseq
        %v841 = vshrl.u32 %v840, 7
        %v842 = vsub.s32 0, %v841
        %v843 = vrot.slane %v838, %v842
        %v845 = vmul.f32 %v824, %v843
        %v846 = vmul.f32 %v827, %v843
        %v847 = vmul.f32 %v832, %v843
        %v848 = vmul.f32 %v835, %v843
        %v849 = vld [vmem:[%s4] sm:$0x1]
        %v851 = vlaneseq
        %v852 = vshrl.u32 %v851, 7
        %v853 = vsub.s32 0, %v852
        %v854 = vrot.slane %v849, %v853
        %v856 = vadd.f32 %v845, %v854
        %v857 = vadd.f32 %v846, %v854
        %v858 = vadd.f32 %v847, %v854
        %v859 = vadd.f32 %v848, %v854
        %v860 = vmax.f32 %v856, 0.0
        %v861 = vmax.f32 %v857, 0.0
        %v862 = vmax.f32 %v858, 0.0
        %v863 = vmax.f32 %v859, 0.0
        %v864 = vpack.c.bf16 %v861, %v860
        %v865 = vpack.c.bf16 %v863, %v862
        %p866 = scmp.gt.s32.totalorder %s30, 0
        %s867 = scalar_select %p866, 1, 0
        %v868 = vstv %s867
        %vm869 = vcmp.eq.s32.totalorder %v868, 1
        %v870 = vsel %vm869, %v864, 0
        %871 = vst.msk [vmem:[#allocation2] sm:$0xff] %vm710, %v870
        %p872 = scmp.lt.s32.totalorder %s30, 1
        %s873 = scalar_select %p872, 1, 0
        %v874 = vstv %s873
        %vm875 = vcmp.eq.s32.totalorder %v874, 1
        %v876 = vsel %vm875, %v865, 0
        %s877 = scalar_lea.vmem [#allocation2], 72
        %878 = vst.msk [vmem:[%s877] sm:$0xff] %vm710, %v876
        %v879 = vld [vmem:[#allocation2] sm:$0xff]
        %v880 = vld [vmem:[#allocation2 + $0x8] sm:$0xff]
        %v881 = vld [vmem:[#allocation2 + $0x10] sm:$0xff]
        %v882 = vld [vmem:[#allocation2 + $0x18] sm:$0xff]
        %v883 = vld [vmem:[#allocation2 + $0x20] sm:$0xff]
        %v884 = vld [vmem:[#allocation2 + $0x28] sm:$0xff]
        %v885 = vld [vmem:[#allocation2 + $0x30] sm:$0xff]
        %v886 = vld [vmem:[#allocation2 + $0x38] sm:$0xff]
        %v887 = vld [vmem:[%s5] sm:$0xf]
        %v888 = vld [vmem:[%s5 + $0x4] sm:$0xf]
        %v889 = vld [vmem:[%s5 + $0x8] sm:$0xf]
        %v890 = vld [vmem:[%s5 + $0xc] sm:$0xf]
        %v895 = vunpack.c.l.b16 %v887
        %v896 = vunpack.c.l.b16 %v888
        %v897 = vunpack.c.l.b16 %v889
        %v898 = vunpack.c.l.b16 %v890
        %v899 = vpack.c.b16 %v896, %v895
        %v900 = vpack.c.b16 %v898, %v897
        %v904 = vsel %vm710, %v879, 0
        %v907 = vsel %vm710, %v880, 0
        %v910 = vsel %vm710, %v881, 0
        %v913 = vsel %vm710, %v882, 0
        %v916 = vsel %vm710, %v883, 0
        %v919 = vsel %vm710, %v884, 0
        %v922 = vsel %vm710, %v885, 0
        %v925 = vsel %vm710, %v886, 0
        %927 = vmatprep.subr.bf16.mxu0 0
        %928 = vmatpush1.bf16.msra.mxu0 %v899
        %929 = vmatprep.subr.bf16.mxu0 0
        %930 = vmatpush1.bf16.msra.mxu0 %v900
        %931 = vmatprep.subr.bf16.mxu0 0
        %932 = vmatpush1.bf16.msra.mxu0 0
        %933 = vmatprep.subr.bf16.mxu0 0
        %934 = vmatpush1.bf16.msra.mxu0 0
        %935 = vmatprep.subr.bf16.mxu0 0
        %936 = vmatpush1.bf16.msra.mxu0 0
        %937 = vmatprep.subr.bf16.mxu0 0
        %938 = vmatpush1.bf16.msra.mxu0 0
        %939 = vmatprep.subr.bf16.mxu0 0
        %940 = vmatpush1.bf16.msra.mxu0 0
        %941 = vmatprep.subr.bf16.mxu0 0
        %942 = vmatpush1.bf16.msra.mxu0 0
        %943 = vmatprep.subr.bf16.mxu0 0
        %944 = vmatpush1.bf16.msra.mxu0 0
        %945 = vmatprep.subr.bf16.mxu0 0
        %946 = vmatpush1.bf16.msra.mxu0 0
        %947 = vmatprep.subr.bf16.mxu0 0
        %948 = vmatpush1.bf16.msra.mxu0 0
        %949 = vmatprep.subr.bf16.mxu0 0
        %950 = vmatpush1.bf16.msra.mxu0 0
        %951 = vmatprep.subr.bf16.mxu0 0
        %952 = vmatpush1.bf16.msra.mxu0 0
        %953 = vmatprep.subr.bf16.mxu0 0
        %954 = vmatpush1.bf16.msra.mxu0 0
        %955 = vmatprep.subr.bf16.mxu0 0
        %956 = vmatpush1.bf16.msra.mxu0 0
        %957 = vmatprep.subr.bf16.mxu0 0
        %958 = vmatpush1.bf16.msra.mxu0 0
        %959 = vmatprep.mubr.bf16.mxu0 0
        %960 = vmatmul.mubr.bf16.gmra.mrb[0].mxu0 %v904
        %v961 = vpop.f32.mrb[0].mxu0
        %v962 = vadd.f32 0.0, %v961
        %v963 = vpop.f32.mrb[0].mxu0
        %v964 = vpop.f32.mrb[0].mxu0
        %v965 = vadd.f32 0.0, %v964
        %v966 = vpop.f32.mrb[0].mxu0
        %967 = vmatprep.mubr.bf16.mxu0 0
        %968 = vmatmul.mubr.bf16.gmra.mrb[0].mxu0 %v907
        %v969 = vpop.f32.mrb[0].mxu0
        %v970 = vadd.f32 0.0, %v969
        %v971 = vpop.f32.mrb[0].mxu0
        %v972 = vpop.f32.mrb[0].mxu0
        %v973 = vadd.f32 0.0, %v972
        %v974 = vpop.f32.mrb[0].mxu0
        %975 = vmatprep.mubr.bf16.mxu0 0
        %976 = vmatmul.mubr.bf16.gmra.mrb[0].mxu0 %v910
        %v977 = vpop.f32.mrb[0].mxu0
        %v978 = vadd.f32 0.0, %v977
        %v979 = vpop.f32.mrb[0].mxu0
        %v980 = vpop.f32.mrb[0].mxu0
        %v981 = vadd.f32 0.0, %v980
        %v982 = vpop.f32.mrb[0].mxu0
        %983 = vmatprep.mubr.bf16.mxu0 0
        %984 = vmatmul.mubr.bf16.gmra.mrb[0].mxu0 %v913
        %v985 = vpop.f32.mrb[0].mxu0
        %v986 = vadd.f32 0.0, %v985
        %v987 = vpop.f32.mrb[0].mxu0
        %v988 = vpop.f32.mrb[0].mxu0
        %v989 = vadd.f32 0.0, %v988
        %v990 = vpop.f32.mrb[0].mxu0
        %991 = vmatprep.mubr.bf16.mxu0 0
        %992 = vmatmul.mubr.bf16.gmra.mrb[0].mxu0 %v916
        %v993 = vpop.f32.mrb[0].mxu0
        %v994 = vadd.f32 0.0, %v993
        %v995 = vpop.f32.mrb[0].mxu0
        %v996 = vpop.f32.mrb[0].mxu0
        %v997 = vadd.f32 0.0, %v996
        %v998 = vpop.f32.mrb[0].mxu0
        %999 = vmatprep.mubr.bf16.mxu0 0
        %1000 = vmatmul.mubr.bf16.gmra.mrb[0].mxu0 %v919
        %v1001 = vpop.f32.mrb[0].mxu0
        %v1002 = vadd.f32 0.0, %v1001
        %v1003 = vpop.f32.mrb[0].mxu0
        %v1004 = vpop.f32.mrb[0].mxu0
        %v1005 = vadd.f32 0.0, %v1004
        %v1006 = vpop.f32.mrb[0].mxu0
        %1007 = vmatprep.mubr.bf16.mxu0 0
        %1008 = vmatmul.mubr.bf16.gmra.mrb[0].mxu0 %v922
        %v1009 = vpop.f32.mrb[0].mxu0
        %v1010 = vadd.f32 0.0, %v1009
        %v1011 = vpop.f32.mrb[0].mxu0
        %v1012 = vpop.f32.mrb[0].mxu0
        %v1013 = vadd.f32 0.0, %v1012
        %v1014 = vpop.f32.mrb[0].mxu0
        %1015 = vmatprep.mubr.bf16.mxu0 0
        %1016 = vmatmul.mubr.bf16.gmra.mrb[0].mxu0 %v925
        %v1017 = vpop.f32.mrb[0].mxu0
        %v1018 = vadd.f32 0.0, %v1017
        %v1019 = vpop.f32.mrb[0].mxu0
        %v1020 = vpop.f32.mrb[0].mxu0
        %v1021 = vadd.f32 0.0, %v1020
        %v1022 = vpop.f32.mrb[0].mxu0
        %1023 = vdwg.mxu0
        %1040 = vrot.lane.b32.xlu0 %v962, 96
        %v1041 = vpop.permute.xlu0 %1040
        %1042 = vrot.lane.b32.xlu0 %v965, 96
        %v1043 = vpop.permute.xlu0 %1042
        %1044 = vrot.lane.b32.xlu0 %v970, 96
        %v1045 = vpop.permute.xlu0 %1044
        %1046 = vrot.lane.b32.xlu0 %v973, 96
        %v1047 = vpop.permute.xlu0 %1046
        %1048 = vrot.lane.b32.xlu0 %v978, 96
        %v1049 = vpop.permute.xlu0 %1048
        %1050 = vrot.lane.b32.xlu0 %v981, 96
        %v1051 = vpop.permute.xlu0 %1050
        %1052 = vrot.lane.b32.xlu0 %v986, 96
        %v1053 = vpop.permute.xlu0 %1052
        %1054 = vrot.lane.b32.xlu0 %v989, 96
        %v1055 = vpop.permute.xlu0 %1054
        %1056 = vrot.lane.b32.xlu0 %v994, 96
        %v1057 = vpop.permute.xlu0 %1056
        %1058 = vrot.lane.b32.xlu0 %v997, 96
        %v1059 = vpop.permute.xlu0 %1058
        %1060 = vrot.lane.b32.xlu0 %v1002, 96
        %v1061 = vpop.permute.xlu0 %1060
        %1062 = vrot.lane.b32.xlu0 %v1005, 96
        %v1063 = vpop.permute.xlu0 %1062
        %1064 = vrot.lane.b32.xlu0 %v1010, 96
        %v1065 = vpop.permute.xlu0 %1064
        %1066 = vrot.lane.b32.xlu0 %v1013, 96
        %v1067 = vpop.permute.xlu0 %1066
        %1068 = vrot.lane.b32.xlu0 %v1018, 96
        %v1069 = vpop.permute.xlu0 %1068
        %1070 = vrot.lane.b32.xlu0 %v1021, 96
        %v1071 = vpop.permute.xlu0 %1070
        %1088 = vst.msk [vmem:[#allocation3] sm:$0xff] %vm710, %v1041
        %1089 = vst.msk [vmem:[#allocation3 + $0x8] sm:$0xff] %vm710, %v1043
        %1090 = vst.msk [vmem:[#allocation3 + $0x10] sm:$0xff] %vm710, %v1045
        %1091 = vst.msk [vmem:[#allocation3 + $0x18] sm:$0xff] %vm710, %v1047
        %1092 = vst.msk [vmem:[#allocation3 + $0x20] sm:$0xff] %vm710, %v1049
        %1093 = vst.msk [vmem:[#allocation3 + $0x28] sm:$0xff] %vm710, %v1051
        %1094 = vst.msk [vmem:[#allocation3 + $0x30] sm:$0xff] %vm710, %v1053
        %1095 = vst.msk [vmem:[#allocation3 + $0x38] sm:$0xff] %vm710, %v1055
        %1096 = vst.msk [vmem:[#allocation3 + $0x40] sm:$0xff] %vm710, %v1057
        %1097 = vst.msk [vmem:[#allocation3 + $0x48] sm:$0xff] %vm710, %v1059
        %1098 = vst.msk [vmem:[#allocation3 + $0x50] sm:$0xff] %vm710, %v1061
        %1099 = vst.msk [vmem:[#allocation3 + $0x58] sm:$0xff] %vm710, %v1063
        %1100 = vst.msk [vmem:[#allocation3 + $0x60] sm:$0xff] %vm710, %v1065
        %1101 = vst.msk [vmem:[#allocation3 + $0x68] sm:$0xff] %vm710, %v1067
        %1102 = vst.msk [vmem:[#allocation3 + $0x70] sm:$0xff] %vm710, %v1069
        %1103 = vst.msk [vmem:[#allocation3 + $0x78] sm:$0xff] %vm710, %v1071
        %v1104 = vld [vmem:[#allocation3 + $0x1] sm:$0xff]
        %v1105 = vld [vmem:[#allocation3 + $0x9] sm:$0x7f]
        %v1106 = vld [vmem:[#allocation3 + $0x11] sm:$0xff]
        %v1107 = vld [vmem:[#allocation3 + $0x19] sm:$0x7f]
        %v1108 = vld [vmem:[#allocation3 + $0x21] sm:$0xff]
        %v1109 = vld [vmem:[#allocation3 + $0x29] sm:$0x7f]
        %v1110 = vld [vmem:[#allocation3 + $0x31] sm:$0xff]
        %v1111 = vld [vmem:[#allocation3 + $0x39] sm:$0x7f]
        %v1112 = vld [vmem:[#allocation3 + $0x41] sm:$0xff]
        %v1113 = vld [vmem:[#allocation3 + $0x49] sm:$0x7f]
        %v1114 = vld [vmem:[#allocation3 + $0x51] sm:$0xff]
        %v1115 = vld [vmem:[#allocation3 + $0x59] sm:$0x7f]
        %v1116 = vld [vmem:[#allocation3 + $0x61] sm:$0xff]
        %v1117 = vld [vmem:[#allocation3 + $0x69] sm:$0x7f]
        %v1118 = vld [vmem:[#allocation3 + $0x71] sm:$0xff]
        %v1119 = vld [vmem:[#allocation3 + $0x79] sm:$0x7f]
        %v1120 = vadd.f32 %v1104, %v962
        %v1121 = vadd.f32 %v1105, %v965
        %v1122 = vadd.f32 %v1106, %v970
        %v1123 = vadd.f32 %v1107, %v973
        %v1124 = vadd.f32 %v1108, %v978
        %v1125 = vadd.f32 %v1109, %v981
        %v1126 = vadd.f32 %v1110, %v986
        %v1127 = vadd.f32 %v1111, %v989
        %v1128 = vadd.f32 %v1112, %v994
        %v1129 = vadd.f32 %v1113, %v997
        %v1130 = vadd.f32 %v1114, %v1002
        %v1131 = vadd.f32 %v1115, %v1005
        %v1132 = vadd.f32 %v1116, %v1010
        %v1133 = vadd.f32 %v1117, %v1013
        %v1134 = vadd.f32 %v1118, %v1018
        %v1135 = vadd.f32 %v1119, %v1021
        %1136 = vst.msk [vmem:[#allocation3 + $0x1] sm:$0xff] %vm710, %v1120
        %vm1137 = vcmask 260096
        %1138 = vst.msk [vmem:[#allocation3 + $0x9] sm:$0x7f] %vm1137, %v1121
        %1139 = vst.msk [vmem:[#allocation3 + $0x11] sm:$0xff] %vm710, %v1122
        %1140 = vst.msk [vmem:[#allocation3 + $0x19] sm:$0x7f] %vm1137, %v1123
        %1141 = vst.msk [vmem:[#allocation3 + $0x21] sm:$0xff] %vm710, %v1124
        %1142 = vst.msk [vmem:[#allocation3 + $0x29] sm:$0x7f] %vm1137, %v1125
        %1143 = vst.msk [vmem:[#allocation3 + $0x31] sm:$0xff] %vm710, %v1126
        %1144 = vst.msk [vmem:[#allocation3 + $0x39] sm:$0x7f] %vm1137, %v1127
        %1145 = vst.msk [vmem:[#allocation3 + $0x41] sm:$0xff] %vm710, %v1128
        %1146 = vst.msk [vmem:[#allocation3 + $0x49] sm:$0x7f] %vm1137, %v1129
        %1147 = vst.msk [vmem:[#allocation3 + $0x51] sm:$0xff] %vm710, %v1130
        %1148 = vst.msk [vmem:[#allocation3 + $0x59] sm:$0x7f] %vm1137, %v1131
        %1149 = vst.msk [vmem:[#allocation3 + $0x61] sm:$0xff] %vm710, %v1132
        %1150 = vst.msk [vmem:[#allocation3 + $0x69] sm:$0x7f] %vm1137, %v1133
        %1151 = vst.msk [vmem:[#allocation3 + $0x71] sm:$0xff] %vm710, %v1134
        %1152 = vst.msk [vmem:[#allocation3 + $0x79] sm:$0x7f] %vm1137, %v1135
        %v1153 = vld [vmem:[#allocation3] sm:$0xff]
        %v1154 = vld [vmem:[#allocation3 + $0x8] sm:$0x7f]
        %v1155 = vld [vmem:[#allocation3 + $0x10] sm:$0xff]
        %v1156 = vld [vmem:[#allocation3 + $0x18] sm:$0x7f]
        %v1157 = vld [vmem:[#allocation3 + $0x20] sm:$0xff]
        %v1158 = vld [vmem:[#allocation3 + $0x28] sm:$0x7f]
        %v1159 = vld [vmem:[#allocation3 + $0x30] sm:$0xff]
        %v1160 = vld [vmem:[#allocation3 + $0x38] sm:$0x7f]
        %v1161 = vld [vmem:[#allocation3 + $0x40] sm:$0xff]
        %v1162 = vld [vmem:[#allocation3 + $0x48] sm:$0x7f]
        %v1163 = vld [vmem:[#allocation3 + $0x50] sm:$0xff]
        %v1164 = vld [vmem:[#allocation3 + $0x58] sm:$0x7f]
        %v1165 = vld [vmem:[#allocation3 + $0x60] sm:$0xff]
        %v1166 = vld [vmem:[#allocation3 + $0x68] sm:$0x7f]
        %v1167 = vld [vmem:[#allocation3 + $0x70] sm:$0xff]
        %v1168 = vld [vmem:[#allocation3 + $0x78] sm:$0x7f]
        %vm1169 = vcmask 1046528
        %v1170 = vrot.slane %v962, 1
        %v1171 = vrot.slane %v965, 1
        %v1172 = vsel %vm1169, %v1170, %v1171
        %v1173 = vrot.slane %v970, 1
        %v1174 = vrot.slane %v973, 1
        %v1175 = vsel %vm1169, %v1173, %v1174
        %v1176 = vrot.slane %v978, 1
        %v1177 = vrot.slane %v981, 1
        %v1178 = vsel %vm1169, %v1176, %v1177
        %v1179 = vrot.slane %v986, 1
        %v1180 = vrot.slane %v989, 1
        %v1181 = vsel %vm1169, %v1179, %v1180
        %v1182 = vrot.slane %v994, 1
        %v1183 = vrot.slane %v997, 1
        %v1184 = vsel %vm1169, %v1182, %v1183
        %v1185 = vrot.slane %v1002, 1
        %v1186 = vrot.slane %v1005, 1
        %v1187 = vsel %vm1169, %v1185, %v1186
        %v1188 = vrot.slane %v1010, 1
        %v1189 = vrot.slane %v1013, 1
        %v1190 = vsel %vm1169, %v1188, %v1189
        %v1191 = vrot.slane %v1018, 1
        %v1192 = vrot.slane %v1021, 1
        %v1193 = vsel %vm1169, %v1191, %v1192
        %1194 = vrot.lane.b32.xlu0 %v1172, 64
        %v1195 = vpop.permute.xlu0 %1194
        %1196 = vrot.lane.b32.xlu0 %v1171, 64
        %v1197 = vpop.permute.xlu0 %1196
        %1198 = vrot.lane.b32.xlu0 %v1175, 64
        %v1199 = vpop.permute.xlu0 %1198
        %1200 = vrot.lane.b32.xlu0 %v1174, 64
        %v1201 = vpop.permute.xlu0 %1200
        %1202 = vrot.lane.b32.xlu0 %v1178, 64
        %v1203 = vpop.permute.xlu0 %1202
        %1204 = vrot.lane.b32.xlu0 %v1177, 64
        %v1205 = vpop.permute.xlu0 %1204
        %1206 = vrot.lane.b32.xlu0 %v1181, 64
        %v1207 = vpop.permute.xlu0 %1206
        %1208 = vrot.lane.b32.xlu0 %v1180, 64
        %v1209 = vpop.permute.xlu0 %1208
        %1210 = vrot.lane.b32.xlu0 %v1184, 64
        %v1211 = vpop.permute.xlu0 %1210
        %1212 = vrot.lane.b32.xlu0 %v1183, 64
        %v1213 = vpop.permute.xlu0 %1212
        %1214 = vrot.lane.b32.xlu0 %v1187, 64
        %v1215 = vpop.permute.xlu0 %1214
        %1216 = vrot.lane.b32.xlu0 %v1186, 64
        %v1217 = vpop.permute.xlu0 %1216
        %1218 = vrot.lane.b32.xlu0 %v1190, 64
        %v1219 = vpop.permute.xlu0 %1218
        %1220 = vrot.lane.b32.xlu0 %v1189, 64
        %v1221 = vpop.permute.xlu0 %1220
        %1222 = vrot.lane.b32.xlu0 %v1193, 64
        %v1223 = vpop.permute.xlu0 %1222
        %1224 = vrot.lane.b32.xlu0 %v1192, 64
        %v1225 = vpop.permute.xlu0 %1224
        %v1242 = vadd.f32 %v1153, %v1195
        %v1243 = vadd.f32 %v1154, %v1197
        %v1244 = vadd.f32 %v1155, %v1199
        %v1245 = vadd.f32 %v1156, %v1201
        %v1246 = vadd.f32 %v1157, %v1203
        %v1247 = vadd.f32 %v1158, %v1205
        %v1248 = vadd.f32 %v1159, %v1207
        %v1249 = vadd.f32 %v1160, %v1209
        %v1250 = vadd.f32 %v1161, %v1211
        %v1251 = vadd.f32 %v1162, %v1213
        %v1252 = vadd.f32 %v1163, %v1215
        %v1253 = vadd.f32 %v1164, %v1217
        %v1254 = vadd.f32 %v1165, %v1219
        %v1255 = vadd.f32 %v1166, %v1221
        %v1256 = vadd.f32 %v1167, %v1223
        %v1257 = vadd.f32 %v1168, %v1225
        %1258 = vst.msk [vmem:[#allocation3] sm:$0xff] %vm710, %v1242
        %1259 = vst.msk [vmem:[#allocation3 + $0x8] sm:$0x7f] %vm1137, %v1243
        %1260 = vst.msk [vmem:[#allocation3 + $0x10] sm:$0xff] %vm710, %v1244
        %1261 = vst.msk [vmem:[#allocation3 + $0x18] sm:$0x7f] %vm1137, %v1245
        %1262 = vst.msk [vmem:[#allocation3 + $0x20] sm:$0xff] %vm710, %v1246
        %1263 = vst.msk [vmem:[#allocation3 + $0x28] sm:$0x7f] %vm1137, %v1247
        %1264 = vst.msk [vmem:[#allocation3 + $0x30] sm:$0xff] %vm710, %v1248
        %1265 = vst.msk [vmem:[#allocation3 + $0x38] sm:$0x7f] %vm1137, %v1249
        %1266 = vst.msk [vmem:[#allocation3 + $0x40] sm:$0xff] %vm710, %v1250
        %1267 = vst.msk [vmem:[#allocation3 + $0x48] sm:$0x7f] %vm1137, %v1251
        %1268 = vst.msk [vmem:[#allocation3 + $0x50] sm:$0xff] %vm710, %v1252
        %1269 = vst.msk [vmem:[#allocation3 + $0x58] sm:$0x7f] %vm1137, %v1253
        %1270 = vst.msk [vmem:[#allocation3 + $0x60] sm:$0xff] %vm710, %v1254
        %1271 = vst.msk [vmem:[#allocation3 + $0x68] sm:$0x7f] %vm1137, %v1255
        %1272 = vst.msk [vmem:[#allocation3 + $0x70] sm:$0xff] %vm710, %v1256
        %1273 = vst.msk [vmem:[#allocation3 + $0x78] sm:$0x7f] %vm1137, %v1257
        %v1274 = vld [vmem:[%s709] sm:$0xff]
        %v1275 = vld [vmem:[%s709 + $0x8] sm:$0xff]
        %v1276 = vld [vmem:[%s709 + $0x10] sm:$0xff]
        %v1277 = vld [vmem:[%s709 + $0x18] sm:$0xff]
        %v1278 = vld [vmem:[%s709 + $0x20] sm:$0xff]
        %v1279 = vld [vmem:[%s709 + $0x28] sm:$0xff]
        %v1280 = vld [vmem:[%s709 + $0x30] sm:$0xff]
        %v1281 = vld [vmem:[%s709 + $0x38] sm:$0xff]
        %s1282 = scalar_lea.vmem %s5, 16
        %v1283 = vld [vmem:[%s1282] sm:$0xf]
        %v1284 = vld [vmem:[%s1282 + $0x4] sm:$0xf]
        %v1285 = vld [vmem:[%s1282 + $0x8] sm:$0xf]
        %v1286 = vld [vmem:[%s1282 + $0xc] sm:$0xf]
        %v1291 = vunpack.c.l.b16 %v1283
        %v1292 = vunpack.c.l.b16 %v1284
        %v1293 = vunpack.c.l.b16 %v1285
        %v1294 = vunpack.c.l.b16 %v1286
        %v1295 = vpack.c.b16 %v1292, %v1291
        %v1296 = vpack.c.b16 %v1294, %v1293
        %v1300 = vsel %vm710, %v1274, 0
        %v1303 = vsel %vm710, %v1275, 0
        %v1306 = vsel %vm710, %v1276, 0
        %v1309 = vsel %vm710, %v1277, 0
        %v1312 = vsel %vm710, %v1278, 0
        %v1315 = vsel %vm710, %v1279, 0
        %v1318 = vsel %vm710, %v1280, 0
        %v1321 = vsel %vm710, %v1281, 0
        %1323 = vmatprep.subr.bf16.mxu0 0
        %1324 = vmatpush1.bf16.msra.mxu0 %v1295
        %1325 = vmatprep.subr.bf16.mxu0 0
        %1326 = vmatpush1.bf16.msra.mxu0 %v1296
        %1327 = vmatprep.subr.bf16.mxu0 0
        %1328 = vmatpush1.bf16.msra.mxu0 0
        %1329 = vmatprep.subr.bf16.mxu0 0
        %1330 = vmatpush1.bf16.msra.mxu0 0
        %1331 = vmatprep.subr.bf16.mxu0 0
        %1332 = vmatpush1.bf16.msra.mxu0 0
        %1333 = vmatprep.subr.bf16.mxu0 0
        %1334 = vmatpush1.bf16.msra.mxu0 0
        %1335 = vmatprep.subr.bf16.mxu0 0
        %1336 = vmatpush1.bf16.msra.mxu0 0
        %1337 = vmatprep.subr.bf16.mxu0 0
        %1338 = vmatpush1.bf16.msra.mxu0 0
        %1339 = vmatprep.subr.bf16.mxu0 0
        %1340 = vmatpush1.bf16.msra.mxu0 0
        %1341 = vmatprep.subr.bf16.mxu0 0
        %1342 = vmatpush1.bf16.msra.mxu0 0
        %1343 = vmatprep.subr.bf16.mxu0 0
        %1344 = vmatpush1.bf16.msra.mxu0 0
        %1345 = vmatprep.subr.bf16.mxu0 0
        %1346 = vmatpush1.bf16.msra.mxu0 0
        %1347 = vmatprep.subr.bf16.mxu0 0
        %1348 = vmatpush1.bf16.msra.mxu0 0
        %1349 = vmatprep.subr.bf16.mxu0 0
        %1350 = vmatpush1.bf16.msra.mxu0 0
        %1351 = vmatprep.subr.bf16.mxu0 0
        %1352 = vmatpush1.bf16.msra.mxu0 0
        %1353 = vmatprep.subr.bf16.mxu0 0
        %1354 = vmatpush1.bf16.msra.mxu0 0
        %1355 = vmatprep.mubr.bf16.mxu0 0
        %1356 = vmatmul.mubr.bf16.gmra.mrb[0].mxu0 %v1300
        %v1357 = vpop.f32.mrb[0].mxu0
        %v1358 = vadd.f32 0.0, %v1357
        %v1359 = vpop.f32.mrb[0].mxu0
        %v1360 = vpop.f32.mrb[0].mxu0
        %v1361 = vadd.f32 0.0, %v1360
        %v1362 = vpop.f32.mrb[0].mxu0
        %1363 = vmatprep.mubr.bf16.mxu0 0
        %1364 = vmatmul.mubr.bf16.gmra.mrb[0].mxu0 %v1303
        %v1365 = vpop.f32.mrb[0].mxu0
        %v1366 = vadd.f32 0.0, %v1365
        %v1367 = vpop.f32.mrb[0].mxu0
        %v1368 = vpop.f32.mrb[0].mxu0
        %v1369 = vadd.f32 0.0, %v1368
        %v1370 = vpop.f32.mrb[0].mxu0
        %1371 = vmatprep.mubr.bf16.mxu0 0
        %1372 = vmatmul.mubr.bf16.gmra.mrb[0].mxu0 %v1306
        %v1373 = vpop.f32.mrb[0].mxu0
        %v1374 = vadd.f32 0.0, %v1373
        %v1375 = vpop.f32.mrb[0].mxu0
        %v1376 = vpop.f32.mrb[0].mxu0
        %v1377 = vadd.f32 0.0, %v1376
        %v1378 = vpop.f32.mrb[0].mxu0
        %1379 = vmatprep.mubr.bf16.mxu0 0
        %1380 = vmatmul.mubr.bf16.gmra.mrb[0].mxu0 %v1309
        %v1381 = vpop.f32.mrb[0].mxu0
        %v1382 = vadd.f32 0.0, %v1381
        %v1383 = vpop.f32.mrb[0].mxu0
        %v1384 = vpop.f32.mrb[0].mxu0
        %v1385 = vadd.f32 0.0, %v1384
        %v1386 = vpop.f32.mrb[0].mxu0
        %1387 = vmatprep.mubr.bf16.mxu0 0
        %1388 = vmatmul.mubr.bf16.gmra.mrb[0].mxu0 %v1312
        %v1389 = vpop.f32.mrb[0].mxu0
        %v1390 = vadd.f32 0.0, %v1389
        %v1391 = vpop.f32.mrb[0].mxu0
        %v1392 = vpop.f32.mrb[0].mxu0
        %v1393 = vadd.f32 0.0, %v1392
        %v1394 = vpop.f32.mrb[0].mxu0
        %1395 = vmatprep.mubr.bf16.mxu0 0
        %1396 = vmatmul.mubr.bf16.gmra.mrb[0].mxu0 %v1315
        %v1397 = vpop.f32.mrb[0].mxu0
        %v1398 = vadd.f32 0.0, %v1397
        %v1399 = vpop.f32.mrb[0].mxu0
        %v1400 = vpop.f32.mrb[0].mxu0
        %v1401 = vadd.f32 0.0, %v1400
        %v1402 = vpop.f32.mrb[0].mxu0
        %1403 = vmatprep.mubr.bf16.mxu0 0
        %1404 = vmatmul.mubr.bf16.gmra.mrb[0].mxu0 %v1318
        %v1405 = vpop.f32.mrb[0].mxu0
        %v1406 = vadd.f32 0.0, %v1405
        %v1407 = vpop.f32.mrb[0].mxu0
        %v1408 = vpop.f32.mrb[0].mxu0
        %v1409 = vadd.f32 0.0, %v1408
        %v1410 = vpop.f32.mrb[0].mxu0
        %1411 = vmatprep.mubr.bf16.mxu0 0
        %1412 = vmatmul.mubr.bf16.gmra.mrb[0].mxu0 %v1321
        %v1413 = vpop.f32.mrb[0].mxu0
        %v1414 = vadd.f32 0.0, %v1413
        %v1415 = vpop.f32.mrb[0].mxu0
        %v1416 = vpop.f32.mrb[0].mxu0
        %v1417 = vadd.f32 0.0, %v1416
        %v1418 = vpop.f32.mrb[0].mxu0
        %1419 = vdwg.mxu0
        %v1420 = vld [vmem:[#allocation3] sm:$0xff]
        %v1421 = vld [vmem:[#allocation3 + $0x8] sm:$0xff]
        %v1422 = vld [vmem:[#allocation3 + $0x10] sm:$0xff]
        %v1423 = vld [vmem:[#allocation3 + $0x18] sm:$0xff]
        %v1424 = vld [vmem:[#allocation3 + $0x20] sm:$0xff]
        %v1425 = vld [vmem:[#allocation3 + $0x28] sm:$0xff]
        %v1426 = vld [vmem:[#allocation3 + $0x30] sm:$0xff]
        %v1427 = vld [vmem:[#allocation3 + $0x38] sm:$0xff]
        %v1428 = vld [vmem:[#allocation3 + $0x40] sm:$0xff]
        %v1429 = vld [vmem:[#allocation3 + $0x48] sm:$0xff]
        %v1430 = vld [vmem:[#allocation3 + $0x50] sm:$0xff]
        %v1431 = vld [vmem:[#allocation3 + $0x58] sm:$0xff]
        %v1432 = vld [vmem:[#allocation3 + $0x60] sm:$0xff]
        %v1433 = vld [vmem:[#allocation3 + $0x68] sm:$0xff]
        %v1434 = vld [vmem:[#allocation3 + $0x70] sm:$0xff]
        %v1435 = vld [vmem:[#allocation3 + $0x78] sm:$0xff]
        %1452 = vrot.lane.b32.xlu0 %v1358, 96
        %v1453 = vpop.permute.xlu0 %1452
        %1454 = vrot.lane.b32.xlu0 %v1361, 96
        %v1455 = vpop.permute.xlu0 %1454
        %1456 = vrot.lane.b32.xlu0 %v1366, 96
        %v1457 = vpop.permute.xlu0 %1456
        %1458 = vrot.lane.b32.xlu0 %v1369, 96
        %v1459 = vpop.permute.xlu0 %1458
        %1460 = vrot.lane.b32.xlu0 %v1374, 96
        %v1461 = vpop.permute.xlu0 %1460
        %1462 = vrot.lane.b32.xlu0 %v1377, 96
        %v1463 = vpop.permute.xlu0 %1462
        %1464 = vrot.lane.b32.xlu0 %v1382, 96
        %v1465 = vpop.permute.xlu0 %1464
        %1466 = vrot.lane.b32.xlu0 %v1385, 96
        %v1467 = vpop.permute.xlu0 %1466
        %1468 = vrot.lane.b32.xlu0 %v1390, 96
        %v1469 = vpop.permute.xlu0 %1468
        %1470 = vrot.lane.b32.xlu0 %v1393, 96
        %v1471 = vpop.permute.xlu0 %1470
        %1472 = vrot.lane.b32.xlu0 %v1398, 96
        %v1473 = vpop.permute.xlu0 %1472
        %1474 = vrot.lane.b32.xlu0 %v1401, 96
        %v1475 = vpop.permute.xlu0 %1474
        %1476 = vrot.lane.b32.xlu0 %v1406, 96
        %v1477 = vpop.permute.xlu0 %1476
        %1478 = vrot.lane.b32.xlu0 %v1409, 96
        %v1479 = vpop.permute.xlu0 %1478
        %1480 = vrot.lane.b32.xlu0 %v1414, 96
        %v1481 = vpop.permute.xlu0 %1480
        %1482 = vrot.lane.b32.xlu0 %v1417, 96
        %v1483 = vpop.permute.xlu0 %1482
        %v1500 = vadd.f32 %v1420, %v1453
        %v1501 = vadd.f32 %v1421, %v1455
        %v1502 = vadd.f32 %v1422, %v1457
        %v1503 = vadd.f32 %v1423, %v1459
        %v1504 = vadd.f32 %v1424, %v1461
        %v1505 = vadd.f32 %v1425, %v1463
        %v1506 = vadd.f32 %v1426, %v1465
        %v1507 = vadd.f32 %v1427, %v1467
        %v1508 = vadd.f32 %v1428, %v1469
        %v1509 = vadd.f32 %v1429, %v1471
        %v1510 = vadd.f32 %v1430, %v1473
        %v1511 = vadd.f32 %v1431, %v1475
        %v1512 = vadd.f32 %v1432, %v1477
        %v1513 = vadd.f32 %v1433, %v1479
        %v1514 = vadd.f32 %v1434, %v1481
        %v1515 = vadd.f32 %v1435, %v1483
        %1516 = vst.msk [vmem:[#allocation3] sm:$0xff] %vm710, %v1500
        %1517 = vst.msk [vmem:[#allocation3 + $0x8] sm:$0xff] %vm710, %v1501
        %1518 = vst.msk [vmem:[#allocation3 + $0x10] sm:$0xff] %vm710, %v1502
        %1519 = vst.msk [vmem:[#allocation3 + $0x18] sm:$0xff] %vm710, %v1503
        %1520 = vst.msk [vmem:[#allocation3 + $0x20] sm:$0xff] %vm710, %v1504
        %1521 = vst.msk [vmem:[#allocation3 + $0x28] sm:$0xff] %vm710, %v1505
        %1522 = vst.msk [vmem:[#allocation3 + $0x30] sm:$0xff] %vm710, %v1506
        %1523 = vst.msk [vmem:[#allocation3 + $0x38] sm:$0xff] %vm710, %v1507
        %1524 = vst.msk [vmem:[#allocation3 + $0x40] sm:$0xff] %vm710, %v1508
        %1525 = vst.msk [vmem:[#allocation3 + $0x48] sm:$0xff] %vm710, %v1509
        %1526 = vst.msk [vmem:[#allocation3 + $0x50] sm:$0xff] %vm710, %v1510
        %1527 = vst.msk [vmem:[#allocation3 + $0x58] sm:$0xff] %vm710, %v1511
        %1528 = vst.msk [vmem:[#allocation3 + $0x60] sm:$0xff] %vm710, %v1512
        %1529 = vst.msk [vmem:[#allocation3 + $0x68] sm:$0xff] %vm710, %v1513
        %1530 = vst.msk [vmem:[#allocation3 + $0x70] sm:$0xff] %vm710, %v1514
        %1531 = vst.msk [vmem:[#allocation3 + $0x78] sm:$0xff] %vm710, %v1515
        %v1532 = vld [vmem:[#allocation3 + $0x1] sm:$0xff]
        %v1533 = vld [vmem:[#allocation3 + $0x9] sm:$0x7f]
        %v1534 = vld [vmem:[#allocation3 + $0x11] sm:$0xff]
        %v1535 = vld [vmem:[#allocation3 + $0x19] sm:$0x7f]
        %v1536 = vld [vmem:[#allocation3 + $0x21] sm:$0xff]
        %v1537 = vld [vmem:[#allocation3 + $0x29] sm:$0x7f]
        %v1538 = vld [vmem:[#allocation3 + $0x31] sm:$0xff]
        %v1539 = vld [vmem:[#allocation3 + $0x39] sm:$0x7f]
        %v1540 = vld [vmem:[#allocation3 + $0x41] sm:$0xff]
        %v1541 = vld [vmem:[#allocation3 + $0x49] sm:$0x7f]
        %v1542 = vld [vmem:[#allocation3 + $0x51] sm:$0xff]
        %v1543 = vld [vmem:[#allocation3 + $0x59] sm:$0x7f]
        %v1544 = vld [vmem:[#allocation3 + $0x61] sm:$0xff]
        %v1545 = vld [vmem:[#allocation3 + $0x69] sm:$0x7f]
        %v1546 = vld [vmem:[#allocation3 + $0x71] sm:$0xff]
        %v1547 = vld [vmem:[#allocation3 + $0x79] sm:$0x7f]
        %v1548 = vadd.f32 %v1532, %v1358
        %v1549 = vadd.f32 %v1533, %v1361
        %v1550 = vadd.f32 %v1534, %v1366
        %v1551 = vadd.f32 %v1535, %v1369
        %v1552 = vadd.f32 %v1536, %v1374
        %v1553 = vadd.f32 %v1537, %v1377
        %v1554 = vadd.f32 %v1538, %v1382
        %v1555 = vadd.f32 %v1539, %v1385
        %v1556 = vadd.f32 %v1540, %v1390
        %v1557 = vadd.f32 %v1541, %v1393
        %v1558 = vadd.f32 %v1542, %v1398
        %v1559 = vadd.f32 %v1543, %v1401
        %v1560 = vadd.f32 %v1544, %v1406
        %v1561 = vadd.f32 %v1545, %v1409
        %v1562 = vadd.f32 %v1546, %v1414
        %v1563 = vadd.f32 %v1547, %v1417
        %1564 = vst.msk [vmem:[#allocation3 + $0x1] sm:$0xff] %vm710, %v1548
        %1565 = vst.msk [vmem:[#allocation3 + $0x9] sm:$0x7f] %vm1137, %v1549
        %1566 = vst.msk [vmem:[#allocation3 + $0x11] sm:$0xff] %vm710, %v1550
        %1567 = vst.msk [vmem:[#allocation3 + $0x19] sm:$0x7f] %vm1137, %v1551
        %1568 = vst.msk [vmem:[#allocation3 + $0x21] sm:$0xff] %vm710, %v1552
        %1569 = vst.msk [vmem:[#allocation3 + $0x29] sm:$0x7f] %vm1137, %v1553
        %1570 = vst.msk [vmem:[#allocation3 + $0x31] sm:$0xff] %vm710, %v1554
        %1571 = vst.msk [vmem:[#allocation3 + $0x39] sm:$0x7f] %vm1137, %v1555
        %1572 = vst.msk [vmem:[#allocation3 + $0x41] sm:$0xff] %vm710, %v1556
        %1573 = vst.msk [vmem:[#allocation3 + $0x49] sm:$0x7f] %vm1137, %v1557
        %1574 = vst.msk [vmem:[#allocation3 + $0x51] sm:$0xff] %vm710, %v1558
        %1575 = vst.msk [vmem:[#allocation3 + $0x59] sm:$0x7f] %vm1137, %v1559
        %1576 = vst.msk [vmem:[#allocation3 + $0x61] sm:$0xff] %vm710, %v1560
        %1577 = vst.msk [vmem:[#allocation3 + $0x69] sm:$0x7f] %vm1137, %v1561
        %1578 = vst.msk [vmem:[#allocation3 + $0x71] sm:$0xff] %vm710, %v1562
        %1579 = vst.msk [vmem:[#allocation3 + $0x79] sm:$0x7f] %vm1137, %v1563
        %v1580 = vld [vmem:[#allocation3] sm:$0xff]
        %v1581 = vld [vmem:[#allocation3 + $0x8] sm:$0x7f]
        %v1582 = vld [vmem:[#allocation3 + $0x10] sm:$0xff]
        %v1583 = vld [vmem:[#allocation3 + $0x18] sm:$0x7f]
        %v1584 = vld [vmem:[#allocation3 + $0x20] sm:$0xff]
        %v1585 = vld [vmem:[#allocation3 + $0x28] sm:$0x7f]
        %v1586 = vld [vmem:[#allocation3 + $0x30] sm:$0xff]
        %v1587 = vld [vmem:[#allocation3 + $0x38] sm:$0x7f]
        %v1588 = vld [vmem:[#allocation3 + $0x40] sm:$0xff]
        %v1589 = vld [vmem:[#allocation3 + $0x48] sm:$0x7f]
        %v1590 = vld [vmem:[#allocation3 + $0x50] sm:$0xff]
        %v1591 = vld [vmem:[#allocation3 + $0x58] sm:$0x7f]
        %v1592 = vld [vmem:[#allocation3 + $0x60] sm:$0xff]
        %v1593 = vld [vmem:[#allocation3 + $0x68] sm:$0x7f]
        %v1594 = vld [vmem:[#allocation3 + $0x70] sm:$0xff]
        %v1595 = vld [vmem:[#allocation3 + $0x78] sm:$0x7f]
        %v1596 = vrot.slane %v1358, 1
        %v1597 = vrot.slane %v1361, 1
        %v1598 = vsel %vm1169, %v1596, %v1597
        %v1599 = vrot.slane %v1366, 1
        %v1600 = vrot.slane %v1369, 1
        %v1601 = vsel %vm1169, %v1599, %v1600
        %v1602 = vrot.slane %v1374, 1
        %v1603 = vrot.slane %v1377, 1
        %v1604 = vsel %vm1169, %v1602, %v1603
        %v1605 = vrot.slane %v1382, 1
        %v1606 = vrot.slane %v1385, 1
        %v1607 = vsel %vm1169, %v1605, %v1606
        %v1608 = vrot.slane %v1390, 1
        %v1609 = vrot.slane %v1393, 1
        %v1610 = vsel %vm1169, %v1608, %v1609
        %v1611 = vrot.slane %v1398, 1
        %v1612 = vrot.slane %v1401, 1
        %v1613 = vsel %vm1169, %v1611, %v1612
        %v1614 = vrot.slane %v1406, 1
        %v1615 = vrot.slane %v1409, 1
        %v1616 = vsel %vm1169, %v1614, %v1615
        %v1617 = vrot.slane %v1414, 1
        %v1618 = vrot.slane %v1417, 1
        %v1619 = vsel %vm1169, %v1617, %v1618
        %1620 = vrot.lane.b32.xlu0 %v1598, 64
        %v1621 = vpop.permute.xlu0 %1620
        %1622 = vrot.lane.b32.xlu0 %v1597, 64
        %v1623 = vpop.permute.xlu0 %1622
        %1624 = vrot.lane.b32.xlu0 %v1601, 64
        %v1625 = vpop.permute.xlu0 %1624
        %1626 = vrot.lane.b32.xlu0 %v1600, 64
        %v1627 = vpop.permute.xlu0 %1626
        %1628 = vrot.lane.b32.xlu0 %v1604, 64
        %v1629 = vpop.permute.xlu0 %1628
        %1630 = vrot.lane.b32.xlu0 %v1603, 64
        %v1631 = vpop.permute.xlu0 %1630
        %1632 = vrot.lane.b32.xlu0 %v1607, 64
        %v1633 = vpop.permute.xlu0 %1632
        %1634 = vrot.lane.b32.xlu0 %v1606, 64
        %v1635 = vpop.permute.xlu0 %1634
        %1636 = vrot.lane.b32.xlu0 %v1610, 64
        %v1637 = vpop.permute.xlu0 %1636
        %1638 = vrot.lane.b32.xlu0 %v1609, 64
        %v1639 = vpop.permute.xlu0 %1638
        %1640 = vrot.lane.b32.xlu0 %v1613, 64
        %v1641 = vpop.permute.xlu0 %1640
        %1642 = vrot.lane.b32.xlu0 %v1612, 64
        %v1643 = vpop.permute.xlu0 %1642
        %1644 = vrot.lane.b32.xlu0 %v1616, 64
        %v1645 = vpop.permute.xlu0 %1644
        %1646 = vrot.lane.b32.xlu0 %v1615, 64
        %v1647 = vpop.permute.xlu0 %1646
        %1648 = vrot.lane.b32.xlu0 %v1619, 64
        %v1649 = vpop.permute.xlu0 %1648
        %1650 = vrot.lane.b32.xlu0 %v1618, 64
        %v1651 = vpop.permute.xlu0 %1650
        %v1668 = vadd.f32 %v1580, %v1621
        %v1669 = vadd.f32 %v1581, %v1623
        %v1670 = vadd.f32 %v1582, %v1625
        %v1671 = vadd.f32 %v1583, %v1627
        %v1672 = vadd.f32 %v1584, %v1629
        %v1673 = vadd.f32 %v1585, %v1631
        %v1674 = vadd.f32 %v1586, %v1633
        %v1675 = vadd.f32 %v1587, %v1635
        %v1676 = vadd.f32 %v1588, %v1637
        %v1677 = vadd.f32 %v1589, %v1639
        %v1678 = vadd.f32 %v1590, %v1641
        %v1679 = vadd.f32 %v1591, %v1643
        %v1680 = vadd.f32 %v1592, %v1645
        %v1681 = vadd.f32 %v1593, %v1647
        %v1682 = vadd.f32 %v1594, %v1649
        %v1683 = vadd.f32 %v1595, %v1651
        %1684 = vst.msk [vmem:[#allocation3] sm:$0xff] %vm710, %v1668
        %1685 = vst.msk [vmem:[#allocation3 + $0x8] sm:$0x7f] %vm1137, %v1669
        %1686 = vst.msk [vmem:[#allocation3 + $0x10] sm:$0xff] %vm710, %v1670
        %1687 = vst.msk [vmem:[#allocation3 + $0x18] sm:$0x7f] %vm1137, %v1671
        %1688 = vst.msk [vmem:[#allocation3 + $0x20] sm:$0xff] %vm710, %v1672
        %1689 = vst.msk [vmem:[#allocation3 + $0x28] sm:$0x7f] %vm1137, %v1673
        %1690 = vst.msk [vmem:[#allocation3 + $0x30] sm:$0xff] %vm710, %v1674
        %1691 = vst.msk [vmem:[#allocation3 + $0x38] sm:$0x7f] %vm1137, %v1675
        %1692 = vst.msk [vmem:[#allocation3 + $0x40] sm:$0xff] %vm710, %v1676
        %1693 = vst.msk [vmem:[#allocation3 + $0x48] sm:$0x7f] %vm1137, %v1677
        %1694 = vst.msk [vmem:[#allocation3 + $0x50] sm:$0xff] %vm710, %v1678
        %1695 = vst.msk [vmem:[#allocation3 + $0x58] sm:$0x7f] %vm1137, %v1679
        %1696 = vst.msk [vmem:[#allocation3 + $0x60] sm:$0xff] %vm710, %v1680
        %1697 = vst.msk [vmem:[#allocation3 + $0x68] sm:$0x7f] %vm1137, %v1681
        %1698 = vst.msk [vmem:[#allocation3 + $0x70] sm:$0xff] %vm710, %v1682
        %1699 = vst.msk [vmem:[#allocation3 + $0x78] sm:$0x7f] %vm1137, %v1683
        %s1700 = scalar_lea.vmem [#allocation2], 16
        %v1701 = vld [vmem:[%s1700] sm:$0xff]
        %v1702 = vld [vmem:[%s1700 + $0x8] sm:$0xff]
        %v1703 = vld [vmem:[%s1700 + $0x10] sm:$0xff]
        %v1704 = vld [vmem:[%s1700 + $0x18] sm:$0xff]
        %v1705 = vld [vmem:[%s1700 + $0x20] sm:$0xff]
        %v1706 = vld [vmem:[%s1700 + $0x28] sm:$0xff]
        %v1707 = vld [vmem:[%s1700 + $0x30] sm:$0xff]
        %v1708 = vld [vmem:[%s1700 + $0x38] sm:$0xff]
        %s1709 = scalar_lea.vmem %s5, 32
        %v1710 = vld [vmem:[%s1709] sm:$0xf]
        %v1711 = vld [vmem:[%s1709 + $0x4] sm:$0xf]
        %v1712 = vld [vmem:[%s1709 + $0x8] sm:$0xf]
        %v1713 = vld [vmem:[%s1709 + $0xc] sm:$0xf]
        %v1718 = vunpack.c.l.b16 %v1710
        %v1719 = vunpack.c.l.b16 %v1711
        %v1720 = vunpack.c.l.b16 %v1712
        %v1721 = vunpack.c.l.b16 %v1713
        %v1722 = vpack.c.b16 %v1719, %v1718
        %v1723 = vpack.c.b16 %v1721, %v1720
        %v1727 = vsel %vm710, %v1701, 0
        %v1730 = vsel %vm710, %v1702, 0
        %v1733 = vsel %vm710, %v1703, 0
        %v1736 = vsel %vm710, %v1704, 0
        %v1739 = vsel %vm710, %v1705, 0
        %v1742 = vsel %vm710, %v1706, 0
        %v1745 = vsel %vm710, %v1707, 0
        %v1748 = vsel %vm710, %v1708, 0
        %1750 = vmatprep.subr.bf16.mxu0 0
        %1751 = vmatpush1.bf16.msra.mxu0 %v1722
        %1752 = vmatprep.subr.bf16.mxu0 0
        %1753 = vmatpush1.bf16.msra.mxu0 %v1723
        %1754 = vmatprep.subr.bf16.mxu0 0
        %1755 = vmatpush1.bf16.msra.mxu0 0
        %1756 = vmatprep.subr.bf16.mxu0 0
        %1757 = vmatpush1.bf16.msra.mxu0 0
        %1758 = vmatprep.subr.bf16.mxu0 0
        %1759 = vmatpush1.bf16.msra.mxu0 0
        %1760 = vmatprep.subr.bf16.mxu0 0
        %1761 = vmatpush1.bf16.msra.mxu0 0
        %1762 = vmatprep.subr.bf16.mxu0 0
        %1763 = vmatpush1.bf16.msra.mxu0 0
        %1764 = vmatprep.subr.bf16.mxu0 0
        %1765 = vmatpush1.bf16.msra.mxu0 0
        %1766 = vmatprep.subr.bf16.mxu0 0
        %1767 = vmatpush1.bf16.msra.mxu0 0
        %1768 = vmatprep.subr.bf16.mxu0 0
        %1769 = vmatpush1.bf16.msra.mxu0 0
        %1770 = vmatprep.subr.bf16.mxu0 0
        %1771 = vmatpush1.bf16.msra.mxu0 0
        %1772 = vmatprep.subr.bf16.mxu0 0
        %1773 = vmatpush1.bf16.msra.mxu0 0
        %1774 = vmatprep.subr.bf16.mxu0 0
        %1775 = vmatpush1.bf16.msra.mxu0 0
        %1776 = vmatprep.subr.bf16.mxu0 0
        %1777 = vmatpush1.bf16.msra.mxu0 0
        %1778 = vmatprep.subr.bf16.mxu0 0
        %1779 = vmatpush1.bf16.msra.mxu0 0
        %1780 = vmatprep.subr.bf16.mxu0 0
        %1781 = vmatpush1.bf16.msra.mxu0 0
        %1782 = vmatprep.mubr.bf16.mxu0 0
        %1783 = vmatmul.mubr.bf16.gmra.mrb[0].mxu0 %v1727
        %v1784 = vpop.f32.mrb[0].mxu0
        %v1785 = vadd.f32 0.0, %v1784
        %v1786 = vpop.f32.mrb[0].mxu0
        %v1787 = vpop.f32.mrb[0].mxu0
        %v1788 = vadd.f32 0.0, %v1787
        %v1789 = vpop.f32.mrb[0].mxu0
        %1790 = vmatprep.mubr.bf16.mxu0 0
        %1791 = vmatmul.mubr.bf16.gmra.mrb[0].mxu0 %v1730
        %v1792 = vpop.f32.mrb[0].mxu0
        %v1793 = vadd.f32 0.0, %v1792
        %v1794 = vpop.f32.mrb[0].mxu0
        %v1795 = vpop.f32.mrb[0].mxu0
        %v1796 = vadd.f32 0.0, %v1795
        %v1797 = vpop.f32.mrb[0].mxu0
        %1798 = vmatprep.mubr.bf16.mxu0 0
        %1799 = vmatmul.mubr.bf16.gmra.mrb[0].mxu0 %v1733
        %v1800 = vpop.f32.mrb[0].mxu0
        %v1801 = vadd.f32 0.0, %v1800
        %v1802 = vpop.f32.mrb[0].mxu0
        %v1803 = vpop.f32.mrb[0].mxu0
        %v1804 = vadd.f32 0.0, %v1803
        %v1805 = vpop.f32.mrb[0].mxu0
        %1806 = vmatprep.mubr.bf16.mxu0 0
        %1807 = vmatmul.mubr.bf16.gmra.mrb[0].mxu0 %v1736
        %v1808 = vpop.f32.mrb[0].mxu0
        %v1809 = vadd.f32 0.0, %v1808
        %v1810 = vpop.f32.mrb[0].mxu0
        %v1811 = vpop.f32.mrb[0].mxu0
        %v1812 = vadd.f32 0.0, %v1811
        %v1813 = vpop.f32.mrb[0].mxu0
        %1814 = vmatprep.mubr.bf16.mxu0 0
        %1815 = vmatmul.mubr.bf16.gmra.mrb[0].mxu0 %v1739
        %v1816 = vpop.f32.mrb[0].mxu0
        %v1817 = vadd.f32 0.0, %v1816
        %v1818 = vpop.f32.mrb[0].mxu0
        %v1819 = vpop.f32.mrb[0].mxu0
        %v1820 = vadd.f32 0.0, %v1819
        %v1821 = vpop.f32.mrb[0].mxu0
        %1822 = vmatprep.mubr.bf16.mxu0 0
        %1823 = vmatmul.mubr.bf16.gmra.mrb[0].mxu0 %v1742
        %v1824 = vpop.f32.mrb[0].mxu0
        %v1825 = vadd.f32 0.0, %v1824
        %v1826 = vpop.f32.mrb[0].mxu0
        %v1827 = vpop.f32.mrb[0].mxu0
        %v1828 = vadd.f32 0.0, %v1827
        %v1829 = vpop.f32.mrb[0].mxu0
        %1830 = vmatprep.mubr.bf16.mxu0 0
        %1831 = vmatmul.mubr.bf16.gmra.mrb[0].mxu0 %v1745
        %v1832 = vpop.f32.mrb[0].mxu0
        %v1833 = vadd.f32 0.0, %v1832
        %v1834 = vpop.f32.mrb[0].mxu0
        %v1835 = vpop.f32.mrb[0].mxu0
        %v1836 = vadd.f32 0.0, %v1835
        %v1837 = vpop.f32.mrb[0].mxu0
        %1838 = vmatprep.mubr.bf16.mxu0 0
        %1839 = vmatmul.mubr.bf16.gmra.mrb[0].mxu0 %v1748
        %v1840 = vpop.f32.mrb[0].mxu0
        %v1841 = vadd.f32 0.0, %v1840
        %v1842 = vpop.f32.mrb[0].mxu0
        %v1843 = vpop.f32.mrb[0].mxu0
        %v1844 = vadd.f32 0.0, %v1843
        %v1845 = vpop.f32.mrb[0].mxu0
        %1846 = vdwg.mxu0
        %v1847 = vld [vmem:[#allocation3] sm:$0xff]
        %v1848 = vld [vmem:[#allocation3 + $0x8] sm:$0xff]
        %v1849 = vld [vmem:[#allocation3 + $0x10] sm:$0xff]
        %v1850 = vld [vmem:[#allocation3 + $0x18] sm:$0xff]
        %v1851 = vld [vmem:[#allocation3 + $0x20] sm:$0xff]
        %v1852 = vld [vmem:[#allocation3 + $0x28] sm:$0xff]
        %v1853 = vld [vmem:[#allocation3 + $0x30] sm:$0xff]
        %v1854 = vld [vmem:[#allocation3 + $0x38] sm:$0xff]
        %v1855 = vld [vmem:[#allocation3 + $0x40] sm:$0xff]
        %v1856 = vld [vmem:[#allocation3 + $0x48] sm:$0xff]
        %v1857 = vld [vmem:[#allocation3 + $0x50] sm:$0xff]
        %v1858 = vld [vmem:[#allocation3 + $0x58] sm:$0xff]
        %v1859 = vld [vmem:[#allocation3 + $0x60] sm:$0xff]
        %v1860 = vld [vmem:[#allocation3 + $0x68] sm:$0xff]
        %v1861 = vld [vmem:[#allocation3 + $0x70] sm:$0xff]
        %v1862 = vld [vmem:[#allocation3 + $0x78] sm:$0xff]
        %1879 = vrot.lane.b32.xlu0 %v1785, 96
        %v1880 = vpop.permute.xlu0 %1879
        %1881 = vrot.lane.b32.xlu0 %v1788, 96
        %v1882 = vpop.permute.xlu0 %1881
        %1883 = vrot.lane.b32.xlu0 %v1793, 96
        %v1884 = vpop.permute.xlu0 %1883
        %1885 = vrot.lane.b32.xlu0 %v1796, 96
        %v1886 = vpop.permute.xlu0 %1885
        %1887 = vrot.lane.b32.xlu0 %v1801, 96
        %v1888 = vpop.permute.xlu0 %1887
        %1889 = vrot.lane.b32.xlu0 %v1804, 96
        %v1890 = vpop.permute.xlu0 %1889
        %1891 = vrot.lane.b32.xlu0 %v1809, 96
        %v1892 = vpop.permute.xlu0 %1891
        %1893 = vrot.lane.b32.xlu0 %v1812, 96
        %v1894 = vpop.permute.xlu0 %1893
        %1895 = vrot.lane.b32.xlu0 %v1817, 96
        %v1896 = vpop.permute.xlu0 %1895
        %1897 = vrot.lane.b32.xlu0 %v1820, 96
        %v1898 = vpop.permute.xlu0 %1897
        %1899 = vrot.lane.b32.xlu0 %v1825, 96
        %v1900 = vpop.permute.xlu0 %1899
        %1901 = vrot.lane.b32.xlu0 %v1828, 96
        %v1902 = vpop.permute.xlu0 %1901
        %1903 = vrot.lane.b32.xlu0 %v1833, 96
        %v1904 = vpop.permute.xlu0 %1903
        %1905 = vrot.lane.b32.xlu0 %v1836, 96
        %v1906 = vpop.permute.xlu0 %1905
        %1907 = vrot.lane.b32.xlu0 %v1841, 96
        %v1908 = vpop.permute.xlu0 %1907
        %1909 = vrot.lane.b32.xlu0 %v1844, 96
        %v1910 = vpop.permute.xlu0 %1909
        %v1927 = vadd.f32 %v1847, %v1880
        %v1928 = vadd.f32 %v1848, %v1882
        %v1929 = vadd.f32 %v1849, %v1884
        %v1930 = vadd.f32 %v1850, %v1886
        %v1931 = vadd.f32 %v1851, %v1888
        %v1932 = vadd.f32 %v1852, %v1890
        %v1933 = vadd.f32 %v1853, %v1892
        %v1934 = vadd.f32 %v1854, %v1894
        %v1935 = vadd.f32 %v1855, %v1896
        %v1936 = vadd.f32 %v1856, %v1898
        %v1937 = vadd.f32 %v1857, %v1900
        %v1938 = vadd.f32 %v1858, %v1902
        %v1939 = vadd.f32 %v1859, %v1904
        %v1940 = vadd.f32 %v1860, %v1906
        %v1941 = vadd.f32 %v1861, %v1908
        %v1942 = vadd.f32 %v1862, %v1910
        %1943 = vst.msk [vmem:[#allocation3] sm:$0xff] %vm710, %v1927
        %1944 = vst.msk [vmem:[#allocation3 + $0x8] sm:$0xff] %vm710, %v1928
        %1945 = vst.msk [vmem:[#allocation3 + $0x10] sm:$0xff] %vm710, %v1929
        %1946 = vst.msk [vmem:[#allocation3 + $0x18] sm:$0xff] %vm710, %v1930
        %1947 = vst.msk [vmem:[#allocation3 + $0x20] sm:$0xff] %vm710, %v1931
        %1948 = vst.msk [vmem:[#allocation3 + $0x28] sm:$0xff] %vm710, %v1932
        %1949 = vst.msk [vmem:[#allocation3 + $0x30] sm:$0xff] %vm710, %v1933
        %1950 = vst.msk [vmem:[#allocation3 + $0x38] sm:$0xff] %vm710, %v1934
        %1951 = vst.msk [vmem:[#allocation3 + $0x40] sm:$0xff] %vm710, %v1935
        %1952 = vst.msk [vmem:[#allocation3 + $0x48] sm:$0xff] %vm710, %v1936
        %1953 = vst.msk [vmem:[#allocation3 + $0x50] sm:$0xff] %vm710, %v1937
        %1954 = vst.msk [vmem:[#allocation3 + $0x58] sm:$0xff] %vm710, %v1938
        %1955 = vst.msk [vmem:[#allocation3 + $0x60] sm:$0xff] %vm710, %v1939
        %1956 = vst.msk [vmem:[#allocation3 + $0x68] sm:$0xff] %vm710, %v1940
        %1957 = vst.msk [vmem:[#allocation3 + $0x70] sm:$0xff] %vm710, %v1941
        %1958 = vst.msk [vmem:[#allocation3 + $0x78] sm:$0xff] %vm710, %v1942
        %v1959 = vld [vmem:[#allocation3 + $0x1] sm:$0xff]
        %v1960 = vld [vmem:[#allocation3 + $0x9] sm:$0x7f]
        %v1961 = vld [vmem:[#allocation3 + $0x11] sm:$0xff]
        %v1962 = vld [vmem:[#allocation3 + $0x19] sm:$0x7f]
        %v1963 = vld [vmem:[#allocation3 + $0x21] sm:$0xff]
        %v1964 = vld [vmem:[#allocation3 + $0x29] sm:$0x7f]
        %v1965 = vld [vmem:[#allocation3 + $0x31] sm:$0xff]
        %v1966 = vld [vmem:[#allocation3 + $0x39] sm:$0x7f]
        %v1967 = vld [vmem:[#allocation3 + $0x41] sm:$0xff]
        %v1968 = vld [vmem:[#allocation3 + $0x49] sm:$0x7f]
        %v1969 = vld [vmem:[#allocation3 + $0x51] sm:$0xff]
        %v1970 = vld [vmem:[#allocation3 + $0x59] sm:$0x7f]
        %v1971 = vld [vmem:[#allocation3 + $0x61] sm:$0xff]
        %v1972 = vld [vmem:[#allocation3 + $0x69] sm:$0x7f]
        %v1973 = vld [vmem:[#allocation3 + $0x71] sm:$0xff]
        %v1974 = vld [vmem:[#allocation3 + $0x79] sm:$0x7f]
        %v1975 = vadd.f32 %v1959, %v1785
        %v1976 = vadd.f32 %v1960, %v1788
        %v1977 = vadd.f32 %v1961, %v1793
        %v1978 = vadd.f32 %v1962, %v1796
        %v1979 = vadd.f32 %v1963, %v1801
        %v1980 = vadd.f32 %v1964, %v1804
        %v1981 = vadd.f32 %v1965, %v1809
        %v1982 = vadd.f32 %v1966, %v1812
        %v1983 = vadd.f32 %v1967, %v1817
        %v1984 = vadd.f32 %v1968, %v1820
        %v1985 = vadd.f32 %v1969, %v1825
        %v1986 = vadd.f32 %v1970, %v1828
        %v1987 = vadd.f32 %v1971, %v1833
        %v1988 = vadd.f32 %v1972, %v1836
        %v1989 = vadd.f32 %v1973, %v1841
        %v1990 = vadd.f32 %v1974, %v1844
        %1991 = vst.msk [vmem:[#allocation3 + $0x1] sm:$0xff] %vm710, %v1975
        %1992 = vst.msk [vmem:[#allocation3 + $0x9] sm:$0x7f] %vm1137, %v1976
        %1993 = vst.msk [vmem:[#allocation3 + $0x11] sm:$0xff] %vm710, %v1977
        %1994 = vst.msk [vmem:[#allocation3 + $0x19] sm:$0x7f] %vm1137, %v1978
        %1995 = vst.msk [vmem:[#allocation3 + $0x21] sm:$0xff] %vm710, %v1979
        %1996 = vst.msk [vmem:[#allocation3 + $0x29] sm:$0x7f] %vm1137, %v1980
        %1997 = vst.msk [vmem:[#allocation3 + $0x31] sm:$0xff] %vm710, %v1981
        %1998 = vst.msk [vmem:[#allocation3 + $0x39] sm:$0x7f] %vm1137, %v1982
        %1999 = vst.msk [vmem:[#allocation3 + $0x41] sm:$0xff] %vm710, %v1983
        %2000 = vst.msk [vmem:[#allocation3 + $0x49] sm:$0x7f] %vm1137, %v1984
        %2001 = vst.msk [vmem:[#allocation3 + $0x51] sm:$0xff] %vm710, %v1985
        %2002 = vst.msk [vmem:[#allocation3 + $0x59] sm:$0x7f] %vm1137, %v1986
        %2003 = vst.msk [vmem:[#allocation3 + $0x61] sm:$0xff] %vm710, %v1987
        %2004 = vst.msk [vmem:[#allocation3 + $0x69] sm:$0x7f] %vm1137, %v1988
        %2005 = vst.msk [vmem:[#allocation3 + $0x71] sm:$0xff] %vm710, %v1989
        %2006 = vst.msk [vmem:[#allocation3 + $0x79] sm:$0x7f] %vm1137, %v1990
        %v2007 = vld [vmem:[#allocation3] sm:$0xff]
        %v2008 = vld [vmem:[#allocation3 + $0x8] sm:$0x7f]
        %v2009 = vld [vmem:[#allocation3 + $0x10] sm:$0xff]
        %v2010 = vld [vmem:[#allocation3 + $0x18] sm:$0x7f]
        %v2011 = vld [vmem:[#allocation3 + $0x20] sm:$0xff]
        %v2012 = vld [vmem:[#allocation3 + $0x28] sm:$0x7f]
        %v2013 = vld [vmem:[#allocation3 + $0x30] sm:$0xff]
        %v2014 = vld [vmem:[#allocation3 + $0x38] sm:$0x7f]
        %v2015 = vld [vmem:[#allocation3 + $0x40] sm:$0xff]
        %v2016 = vld [vmem:[#allocation3 + $0x48] sm:$0x7f]
        %v2017 = vld [vmem:[#allocation3 + $0x50] sm:$0xff]
        %v2018 = vld [vmem:[#allocation3 + $0x58] sm:$0x7f]
        %v2019 = vld [vmem:[#allocation3 + $0x60] sm:$0xff]
        %v2020 = vld [vmem:[#allocation3 + $0x68] sm:$0x7f]
        %v2021 = vld [vmem:[#allocation3 + $0x70] sm:$0xff]
        %v2022 = vld [vmem:[#allocation3 + $0x78] sm:$0x7f]
        %v2023 = vrot.slane %v1785, 1
        %v2024 = vrot.slane %v1788, 1
        %v2025 = vsel %vm1169, %v2023, %v2024
        %v2026 = vrot.slane %v1793, 1
        %v2027 = vrot.slane %v1796, 1
        %v2028 = vsel %vm1169, %v2026, %v2027
        %v2029 = vrot.slane %v1801, 1
        %v2030 = vrot.slane %v1804, 1
        %v2031 = vsel %vm1169, %v2029, %v2030
        %v2032 = vrot.slane %v1809, 1
        %v2033 = vrot.slane %v1812, 1
        %v2034 = vsel %vm1169, %v2032, %v2033
        %v2035 = vrot.slane %v1817, 1
        %v2036 = vrot.slane %v1820, 1
        %v2037 = vsel %vm1169, %v2035, %v2036
        %v2038 = vrot.slane %v1825, 1
        %v2039 = vrot.slane %v1828, 1
        %v2040 = vsel %vm1169, %v2038, %v2039
        %v2041 = vrot.slane %v1833, 1
        %v2042 = vrot.slane %v1836, 1
        %v2043 = vsel %vm1169, %v2041, %v2042
        %v2044 = vrot.slane %v1841, 1
        %v2045 = vrot.slane %v1844, 1
        %v2046 = vsel %vm1169, %v2044, %v2045
        %2047 = vrot.lane.b32.xlu0 %v2025, 64
        %v2048 = vpop.permute.xlu0 %2047
        %2049 = vrot.lane.b32.xlu0 %v2024, 64
        %v2050 = vpop.permute.xlu0 %2049
        %2051 = vrot.lane.b32.xlu0 %v2028, 64
        %v2052 = vpop.permute.xlu0 %2051
        %2053 = vrot.lane.b32.xlu0 %v2027, 64
        %v2054 = vpop.permute.xlu0 %2053
        %2055 = vrot.lane.b32.xlu0 %v2031, 64
        %v2056 = vpop.permute.xlu0 %2055
        %2057 = vrot.lane.b32.xlu0 %v2030, 64
        %v2058 = vpop.permute.xlu0 %2057
        %2059 = vrot.lane.b32.xlu0 %v2034, 64
        %v2060 = vpop.permute.xlu0 %2059
        %2061 = vrot.lane.b32.xlu0 %v2033, 64
        %v2062 = vpop.permute.xlu0 %2061
        %2063 = vrot.lane.b32.xlu0 %v2037, 64
        %v2064 = vpop.permute.xlu0 %2063
        %2065 = vrot.lane.b32.xlu0 %v2036, 64
        %v2066 = vpop.permute.xlu0 %2065
        %2067 = vrot.lane.b32.xlu0 %v2040, 64
        %v2068 = vpop.permute.xlu0 %2067
        %2069 = vrot.lane.b32.xlu0 %v2039, 64
        %v2070 = vpop.permute.xlu0 %2069
        %2071 = vrot.lane.b32.xlu0 %v2043, 64
        %v2072 = vpop.permute.xlu0 %2071
        %2073 = vrot.lane.b32.xlu0 %v2042, 64
        %v2074 = vpop.permute.xlu0 %2073
        %2075 = vrot.lane.b32.xlu0 %v2046, 64
        %v2076 = vpop.permute.xlu0 %2075
        %2077 = vrot.lane.b32.xlu0 %v2045, 64
        %v2078 = vpop.permute.xlu0 %2077
        %v2095 = vadd.f32 %v2007, %v2048
        %v2096 = vadd.f32 %v2008, %v2050
        %v2097 = vadd.f32 %v2009, %v2052
        %v2098 = vadd.f32 %v2010, %v2054
        %v2099 = vadd.f32 %v2011, %v2056
        %v2100 = vadd.f32 %v2012, %v2058
        %v2101 = vadd.f32 %v2013, %v2060
        %v2102 = vadd.f32 %v2014, %v2062
        %v2103 = vadd.f32 %v2015, %v2064
        %v2104 = vadd.f32 %v2016, %v2066
        %v2105 = vadd.f32 %v2017, %v2068
        %v2106 = vadd.f32 %v2018, %v2070
        %v2107 = vadd.f32 %v2019, %v2072
        %v2108 = vadd.f32 %v2020, %v2074
        %v2109 = vadd.f32 %v2021, %v2076
        %v2110 = vadd.f32 %v2022, %v2078
        %2111 = vst.msk [vmem:[#allocation3] sm:$0xff] %vm710, %v2095
        %2112 = vst.msk [vmem:[#allocation3 + $0x8] sm:$0x7f] %vm1137, %v2096
        %2113 = vst.msk [vmem:[#allocation3 + $0x10] sm:$0xff] %vm710, %v2097
        %2114 = vst.msk [vmem:[#allocation3 + $0x18] sm:$0x7f] %vm1137, %v2098
        %2115 = vst.msk [vmem:[#allocation3 + $0x20] sm:$0xff] %vm710, %v2099
        %2116 = vst.msk [vmem:[#allocation3 + $0x28] sm:$0x7f] %vm1137, %v2100
        %2117 = vst.msk [vmem:[#allocation3 + $0x30] sm:$0xff] %vm710, %v2101
        %2118 = vst.msk [vmem:[#allocation3 + $0x38] sm:$0x7f] %vm1137, %v2102
        %2119 = vst.msk [vmem:[#allocation3 + $0x40] sm:$0xff] %vm710, %v2103
        %2120 = vst.msk [vmem:[#allocation3 + $0x48] sm:$0x7f] %vm1137, %v2104
        %2121 = vst.msk [vmem:[#allocation3 + $0x50] sm:$0xff] %vm710, %v2105
        %2122 = vst.msk [vmem:[#allocation3 + $0x58] sm:$0x7f] %vm1137, %v2106
        %2123 = vst.msk [vmem:[#allocation3 + $0x60] sm:$0xff] %vm710, %v2107
        %2124 = vst.msk [vmem:[#allocation3 + $0x68] sm:$0x7f] %vm1137, %v2108
        %2125 = vst.msk [vmem:[#allocation3 + $0x70] sm:$0xff] %vm710, %v2109
        %2126 = vst.msk [vmem:[#allocation3 + $0x78] sm:$0x7f] %vm1137, %v2110
        %v2127 = vld [vmem:[#allocation3] sm:$0xff]
        %v2128 = vld [vmem:[#allocation3 + $0x8] sm:$0xff]
        %v2129 = vld [vmem:[#allocation3 + $0x10] sm:$0xff]
        %v2130 = vld [vmem:[#allocation3 + $0x18] sm:$0xff]
        %v2131 = vld [vmem:[#allocation3 + $0x20] sm:$0xff]
        %v2132 = vld [vmem:[#allocation3 + $0x28] sm:$0xff]
        %v2133 = vld [vmem:[#allocation3 + $0x30] sm:$0xff]
        %v2134 = vld [vmem:[#allocation3 + $0x38] sm:$0xff]
        %v2135 = vld [vmem:[#allocation3 + $0x40] sm:$0xff]
        %v2136 = vld [vmem:[#allocation3 + $0x48] sm:$0xff]
        %v2137 = vld [vmem:[#allocation3 + $0x50] sm:$0xff]
        %v2138 = vld [vmem:[#allocation3 + $0x58] sm:$0xff]
        %v2139 = vld [vmem:[#allocation3 + $0x60] sm:$0xff]
        %v2140 = vld [vmem:[#allocation3 + $0x68] sm:$0xff]
        %v2141 = vld [vmem:[#allocation3 + $0x70] sm:$0xff]
        %v2142 = vld [vmem:[#allocation3 + $0x78] sm:$0xff]
        %v2143 = vld [vmem:[%s6] sm:$0x1]
        %v2145 = vlaneseq
        %v2146 = vshrl.u32 %v2145, 7
        %v2147 = vsub.s32 0, %v2146
        %v2148 = vrot.slane %v2143, %v2147
        %v2150 = vmul.f32 %v2127, %v2148
        %v2151 = vmul.f32 %v2128, %v2148
        %v2152 = vmul.f32 %v2129, %v2148
        %v2153 = vmul.f32 %v2130, %v2148
        %v2154 = vmul.f32 %v2131, %v2148
        %v2155 = vmul.f32 %v2132, %v2148
        %v2156 = vmul.f32 %v2133, %v2148
        %v2157 = vmul.f32 %v2134, %v2148
        %v2158 = vmul.f32 %v2135, %v2148
        %v2159 = vmul.f32 %v2136, %v2148
        %v2160 = vmul.f32 %v2137, %v2148
        %v2161 = vmul.f32 %v2138, %v2148
        %v2162 = vmul.f32 %v2139, %v2148
        %v2163 = vmul.f32 %v2140, %v2148
        %v2164 = vmul.f32 %v2141, %v2148
        %v2165 = vmul.f32 %v2142, %v2148
        %v2166 = vld [vmem:[%s7] sm:$0x1]
        %v2168 = vlaneseq
        %v2169 = vshrl.u32 %v2168, 7
        %v2170 = vsub.s32 0, %v2169
        %v2171 = vrot.slane %v2166, %v2170
        %v2173 = vadd.f32 %v2150, %v2171
        %v2174 = vadd.f32 %v2151, %v2171
        %v2175 = vadd.f32 %v2152, %v2171
        %v2176 = vadd.f32 %v2153, %v2171
        %v2177 = vadd.f32 %v2154, %v2171
        %v2178 = vadd.f32 %v2155, %v2171
        %v2179 = vadd.f32 %v2156, %v2171
        %v2180 = vadd.f32 %v2157, %v2171
        %v2181 = vadd.f32 %v2158, %v2171
        %v2182 = vadd.f32 %v2159, %v2171
        %v2183 = vadd.f32 %v2160, %v2171
        %v2184 = vadd.f32 %v2161, %v2171
        %v2185 = vadd.f32 %v2162, %v2171
        %v2186 = vadd.f32 %v2163, %v2171
        %v2187 = vadd.f32 %v2164, %v2171
        %v2188 = vadd.f32 %v2165, %v2171
        %v2189 = vmax.f32 %v2173, 0.0
        %v2190 = vmax.f32 %v2174, 0.0
        %v2191 = vmax.f32 %v2175, 0.0
        %v2192 = vmax.f32 %v2176, 0.0
        %v2193 = vmax.f32 %v2177, 0.0
        %v2194 = vmax.f32 %v2178, 0.0
        %v2195 = vmax.f32 %v2179, 0.0
        %v2196 = vmax.f32 %v2180, 0.0
        %v2197 = vmax.f32 %v2181, 0.0
        %v2198 = vmax.f32 %v2182, 0.0
        %v2199 = vmax.f32 %v2183, 0.0
        %v2200 = vmax.f32 %v2184, 0.0
        %v2201 = vmax.f32 %v2185, 0.0
        %v2202 = vmax.f32 %v2186, 0.0
        %v2203 = vmax.f32 %v2187, 0.0
        %v2204 = vmax.f32 %v2188, 0.0
        %v2205 = vpack.c.bf16 %v2190, %v2189
        %v2206 = vpack.c.bf16 %v2192, %v2191
        %v2207 = vpack.c.bf16 %v2194, %v2193
        %v2208 = vpack.c.bf16 %v2196, %v2195
        %v2209 = vpack.c.bf16 %v2198, %v2197
        %v2210 = vpack.c.bf16 %v2200, %v2199
        %v2211 = vpack.c.bf16 %v2202, %v2201
        %v2212 = vpack.c.bf16 %v2204, %v2203
        %v2213 = vld [vmem:[%s8] sm:$0xf]
        %v2214 = vld [vmem:[%s8 + $0x4] sm:$0xf]
        %v2215 = vld [vmem:[%s8 + $0x8] sm:$0xf]
        %v2216 = vld [vmem:[%s8 + $0xc] sm:$0xf]
        %v2221 = vunpack.c.l.b16 %v2213
        %v2222 = vunpack.c.l.b16 %v2214
        %v2223 = vunpack.c.l.b16 %v2215
        %v2224 = vunpack.c.l.b16 %v2216
        %v2225 = vpack.c.b16 %v2222, %v2221
        %v2226 = vpack.c.b16 %v2224, %v2223
        %v2230 = vsel %vm710, %v2205, 0
        %v2233 = vsel %vm710, %v2206, 0
        %v2236 = vsel %vm710, %v2207, 0
        %v2239 = vsel %vm710, %v2208, 0
        %v2242 = vsel %vm710, %v2209, 0
        %v2245 = vsel %vm710, %v2210, 0
        %v2248 = vsel %vm710, %v2211, 0
        %v2251 = vsel %vm710, %v2212, 0
        %2253 = vmatprep.subr.bf16.mxu0 0
        %2254 = vmatpush1.bf16.msra.mxu0 %v2225
        %2255 = vmatprep.subr.bf16.mxu0 0
        %2256 = vmatpush1.bf16.msra.mxu0 %v2226
        %2257 = vmatprep.subr.bf16.mxu0 0
        %2258 = vmatpush1.bf16.msra.mxu0 0
        %2259 = vmatprep.subr.bf16.mxu0 0
        %2260 = vmatpush1.bf16.msra.mxu0 0
        %2261 = vmatprep.subr.bf16.mxu0 0
        %2262 = vmatpush1.bf16.msra.mxu0 0
        %2263 = vmatprep.subr.bf16.mxu0 0
        %2264 = vmatpush1.bf16.msra.mxu0 0
        %2265 = vmatprep.subr.bf16.mxu0 0
        %2266 = vmatpush1.bf16.msra.mxu0 0
        %2267 = vmatprep.subr.bf16.mxu0 0
        %2268 = vmatpush1.bf16.msra.mxu0 0
        %2269 = vmatprep.subr.bf16.mxu0 0
        %2270 = vmatpush1.bf16.msra.mxu0 0
        %2271 = vmatprep.subr.bf16.mxu0 0
        %2272 = vmatpush1.bf16.msra.mxu0 0
        %2273 = vmatprep.subr.bf16.mxu0 0
        %2274 = vmatpush1.bf16.msra.mxu0 0
        %2275 = vmatprep.subr.bf16.mxu0 0
        %2276 = vmatpush1.bf16.msra.mxu0 0
        %2277 = vmatprep.subr.bf16.mxu0 0
        %2278 = vmatpush1.bf16.msra.mxu0 0
        %2279 = vmatprep.subr.bf16.mxu0 0
        %2280 = vmatpush1.bf16.msra.mxu0 0
        %2281 = vmatprep.subr.bf16.mxu0 0
        %2282 = vmatpush1.bf16.msra.mxu0 0
        %2283 = vmatprep.subr.bf16.mxu0 0
        %2284 = vmatpush1.bf16.msra.mxu0 0
        %2285 = vmatprep.mubr.bf16.mxu0 0
        %2286 = vmatmul.mubr.bf16.gmra.mrb[0].mxu0 %v2230
        %v2287 = vpop.f32.mrb[0].mxu0
        %v2288 = vadd.f32 0.0, %v2287
        %v2289 = vpop.f32.mrb[0].mxu0
        %v2290 = vpop.f32.mrb[0].mxu0
        %v2291 = vadd.f32 0.0, %v2290
        %v2292 = vpop.f32.mrb[0].mxu0
        %2293 = vmatprep.mubr.bf16.mxu0 0
        %2294 = vmatmul.mubr.bf16.gmra.mrb[0].mxu0 %v2233
        %v2295 = vpop.f32.mrb[0].mxu0
        %v2296 = vadd.f32 0.0, %v2295
        %v2297 = vpop.f32.mrb[0].mxu0
        %v2298 = vpop.f32.mrb[0].mxu0
        %v2299 = vadd.f32 0.0, %v2298
        %v2300 = vpop.f32.mrb[0].mxu0
        %2301 = vmatprep.mubr.bf16.mxu0 0
        %2302 = vmatmul.mubr.bf16.gmra.mrb[0].mxu0 %v2236
        %v2303 = vpop.f32.mrb[0].mxu0
        %v2304 = vadd.f32 0.0, %v2303
        %v2305 = vpop.f32.mrb[0].mxu0
        %v2306 = vpop.f32.mrb[0].mxu0
        %v2307 = vadd.f32 0.0, %v2306
        %v2308 = vpop.f32.mrb[0].mxu0
        %2309 = vmatprep.mubr.bf16.mxu0 0
        %2310 = vmatmul.mubr.bf16.gmra.mrb[0].mxu0 %v2239
        %v2311 = vpop.f32.mrb[0].mxu0
        %v2312 = vadd.f32 0.0, %v2311
        %v2313 = vpop.f32.mrb[0].mxu0
        %v2314 = vpop.f32.mrb[0].mxu0
        %v2315 = vadd.f32 0.0, %v2314
        %v2316 = vpop.f32.mrb[0].mxu0
        %2317 = vmatprep.mubr.bf16.mxu0 0
        %2318 = vmatmul.mubr.bf16.gmra.mrb[0].mxu0 %v2242
        %v2319 = vpop.f32.mrb[0].mxu0
        %v2320 = vadd.f32 0.0, %v2319
        %v2321 = vpop.f32.mrb[0].mxu0
        %v2322 = vpop.f32.mrb[0].mxu0
        %v2323 = vadd.f32 0.0, %v2322
        %v2324 = vpop.f32.mrb[0].mxu0
        %2325 = vmatprep.mubr.bf16.mxu0 0
        %2326 = vmatmul.mubr.bf16.gmra.mrb[0].mxu0 %v2245
        %v2327 = vpop.f32.mrb[0].mxu0
        %v2328 = vadd.f32 0.0, %v2327
        %v2329 = vpop.f32.mrb[0].mxu0
        %v2330 = vpop.f32.mrb[0].mxu0
        %v2331 = vadd.f32 0.0, %v2330
        %v2332 = vpop.f32.mrb[0].mxu0
        %2333 = vmatprep.mubr.bf16.mxu0 0
        %2334 = vmatmul.mubr.bf16.gmra.mrb[0].mxu0 %v2248
        %v2335 = vpop.f32.mrb[0].mxu0
        %v2336 = vadd.f32 0.0, %v2335
        %v2337 = vpop.f32.mrb[0].mxu0
        %v2338 = vpop.f32.mrb[0].mxu0
        %v2339 = vadd.f32 0.0, %v2338
        %v2340 = vpop.f32.mrb[0].mxu0
        %2341 = vmatprep.mubr.bf16.mxu0 0
        %2342 = vmatmul.mubr.bf16.gmra.mrb[0].mxu0 %v2251
        %v2343 = vpop.f32.mrb[0].mxu0
        %v2344 = vadd.f32 0.0, %v2343
        %v2345 = vpop.f32.mrb[0].mxu0
        %v2346 = vpop.f32.mrb[0].mxu0
        %v2347 = vadd.f32 0.0, %v2346
        %v2348 = vpop.f32.mrb[0].mxu0
        %2349 = vdwg.mxu0
        %v2350 = vld [vmem:[%s9] sm:$0x1]
        %v2352 = vlaneseq
        %v2353 = vshrl.u32 %v2352, 7
        %v2354 = vsub.s32 0, %v2353
        %v2355 = vrot.slane %v2350, %v2354
        %v2357 = vmul.f32 %v2288, %v2355
        %v2358 = vmul.f32 %v2291, %v2355
        %v2359 = vmul.f32 %v2296, %v2355
        %v2360 = vmul.f32 %v2299, %v2355
        %v2361 = vmul.f32 %v2304, %v2355
        %v2362 = vmul.f32 %v2307, %v2355
        %v2363 = vmul.f32 %v2312, %v2355
        %v2364 = vmul.f32 %v2315, %v2355
        %v2365 = vmul.f32 %v2320, %v2355
        %v2366 = vmul.f32 %v2323, %v2355
        %v2367 = vmul.f32 %v2328, %v2355
        %v2368 = vmul.f32 %v2331, %v2355
        %v2369 = vmul.f32 %v2336, %v2355
        %v2370 = vmul.f32 %v2339, %v2355
        %v2371 = vmul.f32 %v2344, %v2355
        %v2372 = vmul.f32 %v2347, %v2355
        %v2373 = vld [vmem:[%s10] sm:$0x1]
        %v2375 = vlaneseq
        %v2376 = vshrl.u32 %v2375, 7
        %v2377 = vsub.s32 0, %v2376
        %v2378 = vrot.slane %v2373, %v2377
        %v2380 = vadd.f32 %v2357, %v2378
        %v2381 = vadd.f32 %v2358, %v2378
        %v2382 = vadd.f32 %v2359, %v2378
        %v2383 = vadd.f32 %v2360, %v2378
        %v2384 = vadd.f32 %v2361, %v2378
        %v2385 = vadd.f32 %v2362, %v2378
        %v2386 = vadd.f32 %v2363, %v2378
        %v2387 = vadd.f32 %v2364, %v2378
        %v2388 = vadd.f32 %v2365, %v2378
        %v2389 = vadd.f32 %v2366, %v2378
        %v2390 = vadd.f32 %v2367, %v2378
        %v2391 = vadd.f32 %v2368, %v2378
        %v2392 = vadd.f32 %v2369, %v2378
        %v2393 = vadd.f32 %v2370, %v2378
        %v2394 = vadd.f32 %v2371, %v2378
        %v2395 = vadd.f32 %v2372, %v2378
        %v2396 = vadd.f32 %v2380, %v454
        %v2397 = vadd.f32 %v2381, %v455
        %v2398 = vadd.f32 %v2382, %v456
        %v2399 = vadd.f32 %v2383, %v457
        %v2400 = vadd.f32 %v2384, %v458
        %v2401 = vadd.f32 %v2385, %v459
        %v2402 = vadd.f32 %v2386, %v460
        %v2403 = vadd.f32 %v2387, %v461
        %v2404 = vadd.f32 %v2388, %v462
        %v2405 = vadd.f32 %v2389, %v463
        %v2406 = vadd.f32 %v2390, %v464
        %v2407 = vadd.f32 %v2391, %v465
        %v2408 = vadd.f32 %v2392, %v466
        %v2409 = vadd.f32 %v2393, %v467
        %v2410 = vadd.f32 %v2394, %v468
        %v2411 = vadd.f32 %v2395, %v469
        %v2412 = vmax.f32 %v2396, 0.0
        %v2413 = vmax.f32 %v2397, 0.0
        %v2414 = vmax.f32 %v2398, 0.0
        %v2415 = vmax.f32 %v2399, 0.0
        %v2416 = vmax.f32 %v2400, 0.0
        %v2417 = vmax.f32 %v2401, 0.0
        %v2418 = vmax.f32 %v2402, 0.0
        %v2419 = vmax.f32 %v2403, 0.0
        %v2420 = vmax.f32 %v2404, 0.0
        %v2421 = vmax.f32 %v2405, 0.0
        %v2422 = vmax.f32 %v2406, 0.0
        %v2423 = vmax.f32 %v2407, 0.0
        %v2424 = vmax.f32 %v2408, 0.0
        %v2425 = vmax.f32 %v2409, 0.0
        %v2426 = vmax.f32 %v2410, 0.0
        %v2427 = vmax.f32 %v2411, 0.0
        %2428 = vst [vmem:[%s431] sm:$0xff] %v2412
        %2429 = vst [vmem:[%s431 + $0x8] sm:$0xff] %v2413
        %2430 = vst [vmem:[%s431 + $0x10] sm:$0xff] %v2414
        %2431 = vst [vmem:[%s431 + $0x18] sm:$0xff] %v2415
        %2432 = vst [vmem:[%s431 + $0x20] sm:$0xff] %v2416
        %2433 = vst [vmem:[%s431 + $0x28] sm:$0xff] %v2417
        %2434 = vst [vmem:[%s431 + $0x30] sm:$0xff] %v2418
        %2435 = vst [vmem:[%s431 + $0x38] sm:$0xff] %v2419
        %2436 = vst [vmem:[%s431 + $0x40] sm:$0xff] %v2420
        %2437 = vst [vmem:[%s431 + $0x48] sm:$0xff] %v2421
        %2438 = vst [vmem:[%s431 + $0x50] sm:$0xff] %v2422
        %2439 = vst [vmem:[%s431 + $0x58] sm:$0xff] %v2423
        %2440 = vst [vmem:[%s431 + $0x60] sm:$0xff] %v2424
        %2441 = vst [vmem:[%s431 + $0x68] sm:$0xff] %v2425
        %2442 = vst [vmem:[%s431 + $0x70] sm:$0xff] %v2426
        %2443 = vst [vmem:[%s431 + $0x78] sm:$0xff] %v2427
        %s2444 = sand.u32 %s292, 1
        %s2445 = scalar_lea.sflag [#allocation5], %s2444
        %s2446 = sand.u32 %s292, 1
        %s2447 = smul.addr %s2446, 128
        %s2448 = scalar_lea.vmem [#allocation4], %s2447
        // Predicated region
        $region65: #{bottleneck_forward.1} parent=63 // pred_check
          %p2449 = pneg %p302
        $region66: #{bottleneck_forward.1} parent=63 // pred_check_branch
          %2451 = sbr.rel (%p2449) target = $region68
        $region67: #{bottleneck_forward.1} parent=63 // pred_region
          %s2452 = smul.u32 8, %s30
          %s2454 = ssub.s32 2048, 2048
          %2455 = vsyncadd %s2445, %s2454
          %s2456 = smul.addr %s2452, 2
          %s2457 = smul.addr %s29, 32
          %s2458 = sadd.s32 %s2456, %s2457
          %s2459 = smul.addr %s2458, 128
          %s2460 = scalar_lea.hbm %s11, %s2459
          %s2461 = sshll.u32 %s2448, 4
          %s2462 = int_to_ptr.vmem [resolvable:$true] %s2461
          %2467 = dma.vmem_to_hbm [thread:$0]  %s2462, 2048, %s2460, %s2445, 128, 128, 8
        $region68: #{bottleneck_forward.1} parent=63 // pred_fallthru
          _
      $region64: #{bottleneck_forward.1} parent=5 // pred_fallthru
        _
      %p2468 = scmp.le.s32.totalorder 2, %s20
      // Predicated region
      $region69: #{bottleneck_forward.1} parent=5 // pred_check
        %p2469 = pneg %p2468
      $region70: #{bottleneck_forward.1} parent=5 // pred_check_branch
        %2471 = sbr.rel (%p2469) target = $region72
      $region71: #{bottleneck_forward.1} parent=5 // pred_region
        %s2472 = ssub.s32 %s20, 2
        // Predicated region
        $region73: #{bottleneck_forward.1} parent=71 // pred_check
          %p2473 = pneg %p308
        $region74: #{bottleneck_forward.1} parent=71 // pred_check_branch
          %2475 = sbr.rel (%p2473) target = $region76
        $region75: #{bottleneck_forward.1} parent=71 // pred_region
          %s2476 = sand.u32 %s293, 1
          %s2477 = scalar_lea.sflag [#allocation5], %s2476
          %s2478 = sand.u32 %s293, 1
          %s2479 = smul.addr %s2478, 128
          %s2480 = scalar_lea.vmem [#allocation4], %s2479
          %2481 = dma.done %s2477, 2048
        $region76: #{bottleneck_forward.1} parent=71 // pred_fallthru
          _
      $region72: #{bottleneck_forward.1} parent=5 // pred_fallthru
        _
    $region6: #{bottleneck_forward.1} parent=1 // loop_footer
      %s24 = sadd.s32 1, %s20
    $region7: #{bottleneck_forward.1} parent=1 // loop_footer_branch
      %19 = sbr.rel target = $region3
    $region8: #{bottleneck_forward.1} parent=1 // loop_exit
      _
    %2482 = vsyncpa [#allocation5], 1
    %s2483 = scalar_lea.sflag [#allocation5], 1
    %2484 = vsyncpa %s2483, 1

</llo_original>
